<compile_context>
chip_gen: v7x
topology: tpu7x:2x2x1
jax: 0.10.0
libtpu: 0.0.40
codegen_flags: <defaults>
</compile_context>

<pallas_src>
import functools

import jax
import jax.numpy as jnp
from jax import lax
from jax.experimental import pallas as pl
from jax.experimental.pallas import tpu as pltpu


# ----------------------------------------------------------------------------
# Pallas kernel: reid head over a batch tile.
# Inputs keep their natural layout: (TB, C, S) — channels on sublanes,
# spatial positions on lanes.
# ----------------------------------------------------------------------------
def reid_head_kernel(x2_ref, x3_ref, x4_ref, w_ref, b_ref, y_ref, sides_ref,
                     *, inv_s):
    def side(xr):
        # pow(2).mean(1) over channels, then F.normalize over spatial positions
        # (eps=1e-12 applied as eps^2 on the squared norm; one EUP rsqrt).
        f = xr[...].astype(jnp.float32)                    # (TB, C, S)
        m = jnp.mean(f * f, axis=1)                        # (TB, S)
        ssq = jnp.sum(m * m, axis=1, keepdims=True)        # (TB, 1)
        return m * lax.rsqrt(jnp.maximum(ssq, 1e-24))      # (TB, S)

    l2s = side(x2_ref)
    l3s = side(x3_ref)
    l4s = side(x4_ref)

    # One lane-dense store for all three side maps: (TB, 3, S).
    sides_ref[0] = jnp.stack([l2s, l3s, l4s], axis=1)

    # Attention-like map on layer4 + global average pool.
    ll = l2s + l3s + l4s                                   # (TB, S)
    f4 = x4_ref[...].astype(jnp.float32)                   # (TB, C4, S)
    pooled = jnp.sum(f4 * ll[:, None, :], axis=2) * inv_s  # (TB, C4)

    # self.feat (+ eval-mode feat_bn folded in) and self.classifier_l4 fused
    # into a single MXU matmul; xb = y[:, :F], cls = y[:, F:] split on host.
    y_ref[0] = jnp.dot(pooled, w_ref[...],
                       preferred_element_type=jnp.float32) + b_ref[...]


# ----------------------------------------------------------------------------
# Tiling helpers.
# ----------------------------------------------------------------------------
def _num_grid_cores():
    """Concurrent grid steps worth having (TensorCores per device)."""
    try:
        kind = jax.devices()[0].device_kind.lower()
    except Exception:
        return 1
    # v7x has 2 TensorCores per chip; v4/v5p are megacore.  v5e/v6e have 1 TC,
    # so a single maximal block (grid=(1,)) removes all extra per-step cost.
    if any(t in kind for t in ("v7", "7x", "v4", "v5p")):
        return 2
    return 1


def _pick_batch_tile(b, ctot, c4, s):
    tb = pl.cdiv(b, _num_grid_cores())
    # VMEM bound: double-buffered f32 inputs (2*ctot rows) plus in-kernel f32
    # temporaries (~2*c4 rows) per batch element, kept under ~8 MiB so the
    # same formula is safe on v7x's 64 MiB VMEM / 32 MiB default scoped limit.
    bytes_per_row = (2 * ctot + 2 * c4) * s * 4
    return max(1, min(tb, (8 << 20) // bytes_per_row))


# ----------------------------------------------------------------------------
# Head wrapper: host-side parameter folding + pallas_call.
# ----------------------------------------------------------------------------
def reid_head(l2p, l3p, l4, p):
    """l2p, l3p: maxpooled layer2/layer3 maps; l4: layer4 map. NCHW, same h,w."""
    B, C4, h, w = l4.shape
    S = h * w
    C2, C3 = l2p.shape[1], l3p.shape[1]
    F_ = p["feat_w"].shape[0]
    NC = p["cls_w"].shape[0]

    # Natural (B, C, S) layout straight out of the backbone (free reshape):
    # no XLA-side transpose / concat / pad / cast before the kernel.
    x2 = l2p.reshape(B, C2, S)
    x3 = l3p.reshape(B, C3, S)
    x4 = l4.reshape(B, C4, S)

    tb = _pick_batch_tile(B, C2 + C3 + C4, C4, S)
    gb = pl.cdiv(B, tb)
    Bp = gb * tb
    if Bp > B:
        padb = ((0, Bp - B), (0, 0), (0, 0))
        x2 = jnp.pad(x2, padb)
        x3 = jnp.pad(x3, padb)
        x4 = jnp.pad(x4, padb)

    # Host-side fold: eval-mode BatchNorm1d into the feat Linear, then fuse
    # feat + classifier_l4 into one (C4, F+NC) matmul.
    # TODO(synk): train-mode feat_bn batch statistics are not computed.
    scale = p["bn_gamma"] * lax.rsqrt(p["bn_var"] + 1e-5)
    fw = p["feat_w"].T * scale[None, :]                        # (C4, F)
    fb = (p["feat_b"] - p["bn_mean"]) * scale + p["bn_beta"]   # (F,)
    cw = p["cls_w"].T                                          # (F, NC)
    W = jnp.concatenate([fw, fw @ cw], axis=1).astype(jnp.float32)   # (C4, F+NC)
    bvec = jnp.concatenate([fb, fb @ cw + p["cls_b"]]
                           ).reshape(1, F_ + NC).astype(jnp.float32)

    kernel = functools.partial(reid_head_kernel, inv_s=1.0 / S)
    rep = lambda a: pl.BlockSpec(a.shape, lambda i, _n=a.ndim: (0,) * _n)

    y, sides = pl.pallas_call(
        kernel,
        grid=(gb,),
        in_specs=[pl.BlockSpec((tb, C2, S), lambda i: (i, 0, 0)),
                  pl.BlockSpec((tb, C3, S), lambda i: (i, 0, 0)),
                  pl.BlockSpec((tb, C4, S), lambda i: (i, 0, 0)),
                  rep(W), rep(bvec)],
        out_specs=(pl.BlockSpec((1, tb, F_ + NC), lambda i: (i, 0, 0)),
                   pl.BlockSpec((1, tb, 3, S), lambda i: (i, 0, 0, 0))),
        out_shape=(jax.ShapeDtypeStruct((gb, tb, F_ + NC), jnp.float32),
                   jax.ShapeDtypeStruct((gb, tb, 3, S), jnp.float32)),
        compiler_params=pltpu.CompilerParams(
            dimension_semantics=("parallel",)),
    )(x2, x3, x4, W, bvec)

    y = y.reshape(Bp, F_ + NC)[:B]
    xfeat = y[:, :F_]
    cls = y[:, F_:]
    sides = sides.reshape(Bp, 3, S)[:B]
    to_map = lambda m: m.reshape(B, 1, h, w)
    return (cls, xfeat,
            to_map(sides[:, 0]), to_map(sides[:, 1]), to_map(sides[:, 2]))


# ----------------------------------------------------------------------------
# Backbone + pooling glue (plain JAX).
# ----------------------------------------------------------------------------
def _conv(x, w, stride, pad):
    return lax.conv_general_dilated(
        x, w, (stride, stride), [(pad, pad), (pad, pad)],
        dimension_numbers=("NCHW", "OIHW", "NCHW"))


def _maxpool(x, k, s, pad=0):
    return lax.reduce_window(
        x, jnp.array(-jnp.inf, x.dtype), lax.max,
        (1, 1, k, k), (1, 1, s, s),
        ((0, 0), (0, 0), (pad, pad), (pad, pad)))


def backbone(x, p):
    # TODO(synk): stand-in for torchvision.models.resnetXX(pretrained=True); a
    # reduced backbone with the same stage/stride structure (layer2/3/4 at
    # strides 8/16/32) and deterministic weights is used instead.
    x = jax.nn.relu(_conv(x, p["conv1"], 2, 3))
    x = _maxpool(x, 3, 2, 1)
    x = jax.nn.relu(_conv(x, p["layer1"], 1, 1))
    l2 = jax.nn.relu(_conv(x, p["layer2"], 2, 1))
    l3 = jax.nn.relu(_conv(l2, p["layer3"], 2, 1))
    l4 = jax.nn.relu(_conv(l3, p["layer4"], 2, 1))
    return l2, l3, l4


def resnet_reid_forward(x, p):
    l2, l3, l4 = backbone(x, p)
    # TODO(synk): the non-overlapping maxpools could be folded into the Pallas
    # head; kept as plain-JAX reduce_window here.
    l2p = _maxpool(l2, 4, 4)            # self.layer2_maxpool
    l3p = _maxpool(l3, 2, 2)            # self.layer3_maxpool
    cls_out, x_feat, l2_side, l3_side, l4_side = reid_head(l2p, l3p, l4, p)
    trip_out = cls_out                  # add_l3_softmax=False: trip_out = cls_out
    return cls_out, trip_out, l2_side, l3_side, l4_side, x_feat


# ----------------------------------------------------------------------------
# Deterministic parameter init (mirrors __init__ shapes, scaled-down backbone).
# ----------------------------------------------------------------------------
def init_params(key, c4=128, num_features=32, num_classes=8):
    ks = jax.random.split(key, 8)

    def conv_w(k, shape):  # kaiming-normal, mode='fan_out'
        fan_out = shape[0] * shape[2] * shape[3]
        return jax.random.normal(k, shape, jnp.float32) * jnp.sqrt(2.0 / fan_out)

    c1, c2, c3 = c4 // 8, c4 // 4, c4 // 2
    return {
        "conv1": conv_w(ks[0], (c1, 3, 7, 7)),
        "layer1": conv_w(ks[1], (c1, c1, 3, 3)),
        "layer2": conv_w(ks[2], (c2, c1, 3, 3)),
        "layer3": conv_w(ks[3], (c3, c2, 3, 3)),
        "layer4": conv_w(ks[4], (c4, c3, 3, 3)),
        "feat_w": jax.random.normal(ks[5], (num_features, c4), jnp.float32)
                  * jnp.sqrt(2.0 / num_features),
        "feat_b": jnp.zeros((num_features,), jnp.float32),
        "bn_gamma": jnp.ones((num_features,), jnp.float32),
        "bn_beta": jnp.zeros((num_features,), jnp.float32),
        "bn_mean": jnp.zeros((num_features,), jnp.float32),
        "bn_var": jnp.ones((num_features,), jnp.float32),
        "cls_w": jax.random.normal(ks[6], (num_classes, num_features),
                                   jnp.float32) * 0.001,
        "cls_b": jnp.zeros((num_classes,), jnp.float32),
    }


# ----------------------------------------------------------------------------
# Pure-JAX reference of the reid head (correctness check).
# ----------------------------------------------------------------------------
def reid_head_reference(l2p, l3p, l4, p):
    def side(f):
        B, _, h, w = f.shape
        m = jnp.mean(f * f, axis=1).reshape(B, -1)
        n = jnp.sqrt(jnp.sum(m * m, axis=1, keepdims=True))
        return (m / jnp.maximum(n, 1e-12)).reshape(B, 1, h, w)

    l2s, l3s, l4s = side(l2p), side(l3p), side(l4)
    ll = l2s + l3s + l4s
    pooled = jnp.mean(l4 * ll, axis=(2, 3))
    hp = lax.Precision.HIGHEST
    xf = jnp.dot(pooled, p["feat_w"].T, precision=hp) + p["feat_b"]
    xb = ((xf - p["bn_mean"]) / jnp.sqrt(p["bn_var"] + 1e-5)
          * p["bn_gamma"] + p["bn_beta"])
    cls = jnp.dot(xb, p["cls_w"].T, precision=hp) + p["cls_b"]
    return cls, xb, l2s, l3s, l4s


if __name__ == "__main__":
    key = jax.random.PRNGKey(0)
    pkey, xkey = jax.random.split(key)
    params = init_params(pkey)
    x = jax.random.normal(xkey, (4, 3, 128, 128), jnp.float32)  # NCHW input

    fwd = jax.jit(resnet_reid_forward)
    outs = jax.block_until_ready(fwd(x, params))
    cls_out, trip_out, l2_side, l3_side, l4_side, x_feat = outs

    # Cross-check the Pallas head against a pure-JAX reference on the exact
    # same (f32) feature maps.
    l2, l3, l4 = backbone(x, params)
    l2p, l3p = _maxpool(l2, 4, 4), _maxpool(l3, 2, 2)
    ref = reid_head_reference(l2p, l3p, l4, params)
    got = (cls_out, x_feat, l2_side, l3_side, l4_side)
    for name, g, r in zip(("cls", "feat", "l2_side", "l3_side", "l4_side"),
                          got, ref):
        assert g.shape == r.shape, (name, g.shape, r.shape)
        assert jnp.allclose(g, r, rtol=5e-2, atol=1e-2), (
            name, float(jnp.max(jnp.abs(g - r))))
    assert trip_out.shape == cls_out.shape

    print("KERNEL_OK")
</pallas_src>

<mosaic_0001>
module attributes {stable_mosaic.version = 11 : i64} {
  func.func @reid_head_kernel(%arg0: i32, %arg1: memref<4x32x16xf32, #tpu.memory_space<vmem>>, %arg2: memref<4x64x16xf32, #tpu.memory_space<vmem>>, %arg3: memref<4x128x16xf32, #tpu.memory_space<vmem>>, %arg4: memref<128x40xf32, #tpu.memory_space<vmem>>, %arg5: memref<1x40xf32, #tpu.memory_space<vmem>>, %arg6: memref<1x4x40xf32, #tpu.memory_space<vmem>>, %arg7: memref<1x4x3x16xf32, #tpu.memory_space<vmem>>) attributes {dimension_semantics = [#tpu.dimension_semantics<parallel>], iteration_bounds = array<i64: 1>, scalar_prefetch = 0 : i64, scratch_operands = 0 : i64, tpu.core_type = #tpu.core_type<tc>, window_params = [{transform_indices = @transform_0, window_bounds = array<i64: 4, 32, 16>}, {transform_indices = @transform_1, window_bounds = array<i64: 4, 64, 16>}, {transform_indices = @transform_2, window_bounds = array<i64: 4, 128, 16>}, {pipeline_mode = #tpu.pipeline_mode<synchronous>, transform_indices = @transform_3, window_bounds = array<i64: 128, 40>}, {pipeline_mode = #tpu.pipeline_mode<synchronous>, transform_indices = @transform_4, window_bounds = array<i64: 1, 40>}, {transform_indices = @transform_5, window_bounds = array<i64: 1, 4, 40>}, {transform_indices = @transform_6, window_bounds = array<i64: 1, 4, 3, 16>}]} {
    %c0 = arith.constant 0 : index
    %c0_0 = arith.constant 0 : index
    %c0_1 = arith.constant 0 : index
    %0 = vector.load %arg1[%c0, %c0_0, %c0_1] : memref<4x32x16xf32, #tpu.memory_space<vmem>>, vector<4x32x16xf32>
    %1 = arith.mulf %0, %0 : vector<4x32x16xf32>
    %cst = arith.constant dense<0.000000e+00> : vector<4x16xf32>
    %2 = vector.multi_reduction <add>, %1, %cst [1] : vector<4x32x16xf32> to vector<4x16xf32>
    %cst_2 = arith.constant 3.200000e+01 : f32
    %3 = vector.broadcast %cst_2 : f32 to vector<4x16xf32>
    %4 = arith.divf %2, %3 : vector<4x16xf32>
    %5 = arith.mulf %4, %4 : vector<4x16xf32>
    %cst_3 = arith.constant dense<0.000000e+00> : vector<4xf32>
    %6 = vector.multi_reduction <add>, %5, %cst_3 [1] : vector<4x16xf32> to vector<4xf32>
    %7 = vector.shape_cast %6 : vector<4xf32> to vector<4x1xf32>
    %cst_4 = arith.constant 1.000000e-24 : f32
    %8 = vector.broadcast %cst_4 : f32 to vector<4x1xf32>
    %9 = arith.maximumf %7, %8 : vector<4x1xf32>
    %10 = math.rsqrt %9 : vector<4x1xf32>
    %11 = vector.broadcast %10 : vector<4x1xf32> to vector<4x16xf32>
    %12 = arith.mulf %4, %11 : vector<4x16xf32>
    %c0_5 = arith.constant 0 : index
    %c0_6 = arith.constant 0 : index
    %c0_7 = arith.constant 0 : index
    %13 = vector.load %arg2[%c0_5, %c0_6, %c0_7] : memref<4x64x16xf32, #tpu.memory_space<vmem>>, vector<4x64x16xf32>
    %14 = arith.mulf %13, %13 : vector<4x64x16xf32>
    %cst_8 = arith.constant dense<0.000000e+00> : vector<4x16xf32>
    %15 = vector.multi_reduction <add>, %14, %cst_8 [1] : vector<4x64x16xf32> to vector<4x16xf32>
    %cst_9 = arith.constant 6.400000e+01 : f32
    %16 = vector.broadcast %cst_9 : f32 to vector<4x16xf32>
    %17 = arith.divf %15, %16 : vector<4x16xf32>
    %18 = arith.mulf %17, %17 : vector<4x16xf32>
    %cst_10 = arith.constant dense<0.000000e+00> : vector<4xf32>
    %19 = vector.multi_reduction <add>, %18, %cst_10 [1] : vector<4x16xf32> to vector<4xf32>
    %20 = vector.shape_cast %19 : vector<4xf32> to vector<4x1xf32>
    %cst_11 = arith.constant 1.000000e-24 : f32
    %21 = vector.broadcast %cst_11 : f32 to vector<4x1xf32>
    %22 = arith.maximumf %20, %21 : vector<4x1xf32>
    %23 = math.rsqrt %22 : vector<4x1xf32>
    %24 = vector.broadcast %23 : vector<4x1xf32> to vector<4x16xf32>
    %25 = arith.mulf %17, %24 : vector<4x16xf32>
    %c0_12 = arith.constant 0 : index
    %c0_13 = arith.constant 0 : index
    %c0_14 = arith.constant 0 : index
    %26 = vector.load %arg3[%c0_12, %c0_13, %c0_14] : memref<4x128x16xf32, #tpu.memory_space<vmem>>, vector<4x128x16xf32>
    %27 = arith.mulf %26, %26 : vector<4x128x16xf32>
    %cst_15 = arith.constant dense<0.000000e+00> : vector<4x16xf32>
    %28 = vector.multi_reduction <add>, %27, %cst_15 [1] : vector<4x128x16xf32> to vector<4x16xf32>
    %cst_16 = arith.constant 1.280000e+02 : f32
    %29 = vector.broadcast %cst_16 : f32 to vector<4x16xf32>
    %30 = arith.divf %28, %29 : vector<4x16xf32>
    %31 = arith.mulf %30, %30 : vector<4x16xf32>
    %cst_17 = arith.constant dense<0.000000e+00> : vector<4xf32>
    %32 = vector.multi_reduction <add>, %31, %cst_17 [1] : vector<4x16xf32> to vector<4xf32>
    %33 = vector.shape_cast %32 : vector<4xf32> to vector<4x1xf32>
    %cst_18 = arith.constant 1.000000e-24 : f32
    %34 = vector.broadcast %cst_18 : f32 to vector<4x1xf32>
    %35 = arith.maximumf %33, %34 : vector<4x1xf32>
    %36 = math.rsqrt %35 : vector<4x1xf32>
    %37 = vector.broadcast %36 : vector<4x1xf32> to vector<4x16xf32>
    %38 = arith.mulf %30, %37 : vector<4x16xf32>
    %39 = vector.shape_cast %12 : vector<4x16xf32> to vector<4x1x16xf32>
    %40 = vector.shape_cast %25 : vector<4x16xf32> to vector<4x1x16xf32>
    %41 = vector.shape_cast %38 : vector<4x16xf32> to vector<4x1x16xf32>
    %42 = tpu.concatenate %39, %40, %41 in 1 : vector<4x1x16xf32>, vector<4x1x16xf32>, vector<4x1x16xf32> -> vector<4x3x16xf32>
    %c0_19 = arith.constant 0 : index
    %c0_20 = arith.constant 0 : index
    %c0_21 = arith.constant 0 : index
    %c0_22 = arith.constant 0 : index
    %43 = vector.load %arg7[%c0_19, %c0_20, %c0_21, %c0_22] : memref<1x4x3x16xf32, #tpu.memory_space<vmem>>, vector<1x4x3x16xf32>
    %44 = vector.shape_cast %43 : vector<1x4x3x16xf32> to vector<4x3x16xf32>
    %45 = vector.shape_cast %42 : vector<4x3x16xf32> to vector<1x4x3x16xf32>
    tpu.vector_store %arg7[%c0_19, %c0_20, %c0_21, %c0_22], %45 {strides = array<i32>} : memref<1x4x3x16xf32, #tpu.memory_space<vmem>>, vector<1x4x3x16xf32>,
    %46 = arith.addf %12, %25 : vector<4x16xf32>
    %47 = arith.addf %46, %38 : vector<4x16xf32>
    %c0_23 = arith.constant 0 : index
    %c0_24 = arith.constant 0 : index
    %c0_25 = arith.constant 0 : index
    %48 = vector.load %arg3[%c0_23, %c0_24, %c0_25] : memref<4x128x16xf32, #tpu.memory_space<vmem>>, vector<4x128x16xf32>
    %49 = vector.shape_cast %47 : vector<4x16xf32> to vector<4x1x16xf32>
    %50 = vector.broadcast %49 : vector<4x1x16xf32> to vector<4x128x16xf32>
    %51 = arith.mulf %48, %50 : vector<4x128x16xf32>
    %cst_26 = arith.constant dense<0.000000e+00> : vector<4x128xf32>
    %52 = vector.multi_reduction <add>, %51, %cst_26 [2] : vector<4x128x16xf32> to vector<4x128xf32>
    %cst_27 = arith.constant 6.250000e-02 : f32
    %53 = vector.broadcast %cst_27 : f32 to vector<4x128xf32>
    %54 = arith.mulf %52, %53 : vector<4x128xf32>
    %c0_28 = arith.constant 0 : index
    %c0_29 = arith.constant 0 : index
    %55 = vector.load %arg4[%c0_28, %c0_29] : memref<128x40xf32, #tpu.memory_space<vmem>>, vector<128x40xf32>
    %cst_30 = arith.constant dense<0.000000e+00> : vector<4x40xf32>
    %56 = tpu.matmul %54, %55, %cst_30 {dimension_numbers = #tpu.dot_dimension_numbers<[1], [0], [0], [1], [0, 0, 1, 1], [], []>} : vector<4x128xf32>, vector<128x40xf32>, vector<4x40xf32> -> vector<4x40xf32>
    %c0_31 = arith.constant 0 : index
    %c0_32 = arith.constant 0 : index
    %57 = vector.load %arg5[%c0_31, %c0_32] : memref<1x40xf32, #tpu.memory_space<vmem>>, vector<1x40xf32>
    %58 = vector.broadcast %57 : vector<1x40xf32> to vector<4x40xf32>
    %59 = arith.addf %56, %58 : vector<4x40xf32>
    %c0_33 = arith.constant 0 : index
    %c0_34 = arith.constant 0 : index
    %c0_35 = arith.constant 0 : index
    %60 = vector.load %arg6[%c0_33, %c0_34, %c0_35] : memref<1x4x40xf32, #tpu.memory_space<vmem>>, vector<1x4x40xf32>
    %61 = vector.shape_cast %60 : vector<1x4x40xf32> to vector<4x40xf32>
    %62 = vector.shape_cast %59 : vector<4x40xf32> to vector<1x4x40xf32>
    tpu.vector_store %arg6[%c0_33, %c0_34, %c0_35], %62 {strides = array<i32>} : memref<1x4x40xf32, #tpu.memory_space<vmem>>, vector<1x4x40xf32>,
    return
  }
  func.func @transform_0(%arg0: i32) -> (i32, i32, i32) {
    %c0_i32 = arith.constant 0 : i32
    %c0_i32_0 = arith.constant 0 : i32
    %c0_i32_1 = arith.constant 0 : i32
    return %arg0, %c0_i32, %c0_i32_0 : i32, i32, i32
  }
  func.func @transform_1(%arg0: i32) -> (i32, i32, i32) {
    %c0_i32 = arith.constant 0 : i32
    %c0_i32_0 = arith.constant 0 : i32
    %c0_i32_1 = arith.constant 0 : i32
    return %arg0, %c0_i32, %c0_i32_0 : i32, i32, i32
  }
  func.func @transform_2(%arg0: i32) -> (i32, i32, i32) {
    %c0_i32 = arith.constant 0 : i32
    %c0_i32_0 = arith.constant 0 : i32
    %c0_i32_1 = arith.constant 0 : i32
    return %arg0, %c0_i32, %c0_i32_0 : i32, i32, i32
  }
  func.func @transform_3(%arg0: i32) -> (i32, i32) {
    %c0_i32 = arith.constant 0 : i32
    %c0_i32_0 = arith.constant 0 : i32
    %c0_i32_1 = arith.constant 0 : i32
    return %c0_i32, %c0_i32_0 : i32, i32
  }
  func.func @transform_4(%arg0: i32) -> (i32, i32) {
    %c0_i32 = arith.constant 0 : i32
    %c0_i32_0 = arith.constant 0 : i32
    %c0_i32_1 = arith.constant 0 : i32
    return %c0_i32, %c0_i32_0 : i32, i32
  }
  func.func @transform_5(%arg0: i32) -> (i32, i32, i32) {
    %c0_i32 = arith.constant 0 : i32
    %c0_i32_0 = arith.constant 0 : i32
    %c0_i32_1 = arith.constant 0 : i32
    return %arg0, %c0_i32, %c0_i32_0 : i32, i32, i32
  }
  func.func @transform_6(%arg0: i32) -> (i32, i32, i32, i32) {
    %c0_i32 = arith.constant 0 : i32
    %c0_i32_0 = arith.constant 0 : i32
    %c0_i32_1 = arith.constant 0 : i32
    %c0_i32_2 = arith.constant 0 : i32
    return %arg0, %c0_i32, %c0_i32_0, %c0_i32_1 : i32, i32, i32, i32
  }
}

</mosaic_0001>

<llo_original>
// kernel: resnet_reid_forward.1
$region0: #{resnet_reid_forward.1}
  #allocation0 [shape = 'u32[]', space=smem, size = 0x4, offset = 0x4, fixed_abs, tag = 'smem constant byte address 0x4 - core index']
  #allocation1 [shape = 'u32[144,128]{1,0:T(1,128)}', space=vmem, size = 0x12000, scoped, tag = 'internal scratch']
  %s0 = inlined_call_operand.vmem [shape: f32[4,32,16], index: 0, kind: input, shape index: {}]
  %s1 = inlined_call_operand.vmem [shape: f32[4,64,16], index: 1, kind: input, shape index: {}]
  %s2 = inlined_call_operand.vmem [shape: f32[4,128,16], index: 2, kind: input, shape index: {}]
  %s3 = inlined_call_operand.vmem [shape: f32[128,40], index: 3, kind: input, shape index: {}]
  %s4 = inlined_call_operand.vmem [shape: f32[1,40], index: 4, kind: input, shape index: {}]
  %s5 = inlined_call_operand.vmem [shape: f32[1,4,40], index: 5, kind: output, shape index: {0}]
  %s6 = inlined_call_operand.vmem [shape: f32[1,4,3,16], index: 6, kind: output, shape index: {1}]
  %7 = xla_tuple %s5, %s6
  %s8 = sld [smem:[#allocation0]]
  $region38: #{resnet_reid_forward.1} parent=0
    _
  %s10 = ssub.s32 1, %s8
  %s11 = scalar_select 0, %s10, %s8
  // Predicated region
  $region2: #{resnet_reid_forward.1} parent=0 // pred_check
    _
  $region3: #{resnet_reid_forward.1} parent=0 // pred_check_branch
    %13 = sbr.rel (0) target = $region5
  $region4: #{resnet_reid_forward.1} parent=0 // pred_region
    _
  $region5: #{resnet_reid_forward.1} parent=0 // pred_fallthru
    _
  // Predicated region
  $region6: #{resnet_reid_forward.1} parent=0 // pred_check
    _
  $region7: #{resnet_reid_forward.1} parent=0 // pred_check_branch
    %15 = sbr.rel (0) target = $region9
  $region8: #{resnet_reid_forward.1} parent=0 // pred_region
    _
  $region9: #{resnet_reid_forward.1} parent=0 // pred_fallthru
    _
  // Predicated region
  $region10: #{resnet_reid_forward.1} parent=0 // pred_check
    _
  $region11: #{resnet_reid_forward.1} parent=0 // pred_check_branch
    %17 = sbr.rel (0) target = $region13
  $region12: #{resnet_reid_forward.1} parent=0 // pred_region
    _
  $region13: #{resnet_reid_forward.1} parent=0 // pred_fallthru
    _
  // Predicated region
  $region14: #{resnet_reid_forward.1} parent=0 // pred_check
    _
  $region15: #{resnet_reid_forward.1} parent=0 // pred_check_branch
    %19 = sbr.rel (0) target = $region17
  $region16: #{resnet_reid_forward.1} parent=0 // pred_region
    _
  $region17: #{resnet_reid_forward.1} parent=0 // pred_fallthru
    _
  // Predicated region
  $region18: #{resnet_reid_forward.1} parent=0 // pred_check
    _
  $region19: #{resnet_reid_forward.1} parent=0 // pred_check_branch
    %21 = sbr.rel (0) target = $region21
  $region20: #{resnet_reid_forward.1} parent=0 // pred_region
    _
  $region21: #{resnet_reid_forward.1} parent=0 // pred_fallthru
    _
  %v22 = vld [vmem:[%s0] sm:$0xff]
  %v23 = vld [vmem:[%s0 + $0x8] sm:$0xff]
  %v24 = vld [vmem:[%s0 + $0x10] sm:$0xff]
  %v25 = vld [vmem:[%s0 + $0x18] sm:$0xff]
  %v26 = vld [vmem:[%s0 + $0x20] sm:$0xff]
  %v27 = vld [vmem:[%s0 + $0x28] sm:$0xff]
  %v28 = vld [vmem:[%s0 + $0x30] sm:$0xff]
  %v29 = vld [vmem:[%s0 + $0x38] sm:$0xff]
  %v30 = vld [vmem:[%s0 + $0x40] sm:$0xff]
  %v31 = vld [vmem:[%s0 + $0x48] sm:$0xff]
  %v32 = vld [vmem:[%s0 + $0x50] sm:$0xff]
  %v33 = vld [vmem:[%s0 + $0x58] sm:$0xff]
  %v34 = vld [vmem:[%s0 + $0x60] sm:$0xff]
  %v35 = vld [vmem:[%s0 + $0x68] sm:$0xff]
  %v36 = vld [vmem:[%s0 + $0x70] sm:$0xff]
  %v37 = vld [vmem:[%s0 + $0x78] sm:$0xff]
  %v38 = vmul.f32 %v22, %v22
  %v39 = vmul.f32 %v23, %v23
  %v40 = vmul.f32 %v24, %v24
  %v41 = vmul.f32 %v25, %v25
  %v42 = vmul.f32 %v26, %v26
  %v43 = vmul.f32 %v27, %v27
  %v44 = vmul.f32 %v28, %v28
  %v45 = vmul.f32 %v29, %v29
  %v46 = vmul.f32 %v30, %v30
  %v47 = vmul.f32 %v31, %v31
  %v48 = vmul.f32 %v32, %v32
  %v49 = vmul.f32 %v33, %v33
  %v50 = vmul.f32 %v34, %v34
  %v51 = vmul.f32 %v35, %v35
  %v52 = vmul.f32 %v36, %v36
  %v53 = vmul.f32 %v37, %v37
  %vm54 = vcmask 130048
  %v55 = vsel %vm54, %v38, 0.0
  %v56 = vsel %vm54, %v39, 0.0
  %v57 = vadd.f32 %v55, %v56
  %v58 = vsel %vm54, %v40, 0.0
  %v59 = vadd.f32 %v57, %v58
  %v60 = vsel %vm54, %v41, 0.0
  %v61 = vadd.f32 %v59, %v60
  %v62 = vrot.slane %v61, 4
  %v63 = vadd.f32 %v61, %v62
  %v64 = vrot.slane %v63, 2
  %v65 = vadd.f32 %v63, %v64
  %v66 = vrot.slane %v65, 1
  %v67 = vadd.f32 %v65, %v66
  %v68 = vsel %vm54, %v42, 0.0
  %v69 = vsel %vm54, %v43, 0.0
  %v70 = vadd.f32 %v68, %v69
  %v71 = vsel %vm54, %v44, 0.0
  %v72 = vadd.f32 %v70, %v71
  %v73 = vsel %vm54, %v45, 0.0
  %v74 = vadd.f32 %v72, %v73
  %v75 = vrot.slane %v74, 4
  %v76 = vadd.f32 %v74, %v75
  %v77 = vrot.slane %v76, 2
  %v78 = vadd.f32 %v76, %v77
  %v79 = vrot.slane %v78, 1
  %v80 = vadd.f32 %v78, %v79
  %v81 = vsel %vm54, %v46, 0.0
  %v82 = vsel %vm54, %v47, 0.0
  %v83 = vadd.f32 %v81, %v82
  %v84 = vsel %vm54, %v48, 0.0
  %v85 = vadd.f32 %v83, %v84
  %v86 = vsel %vm54, %v49, 0.0
  %v87 = vadd.f32 %v85, %v86
  %v88 = vrot.slane %v87, 4
  %v89 = vadd.f32 %v87, %v88
  %v90 = vrot.slane %v89, 2
  %v91 = vadd.f32 %v89, %v90
  %v92 = vrot.slane %v91, 1
  %v93 = vadd.f32 %v91, %v92
  %v94 = vsel %vm54, %v50, 0.0
  %v95 = vsel %vm54, %v51, 0.0
  %v96 = vadd.f32 %v94, %v95
  %v97 = vsel %vm54, %v52, 0.0
  %v98 = vadd.f32 %v96, %v97
  %v99 = vsel %vm54, %v53, 0.0
  %v100 = vadd.f32 %v98, %v99
  %v101 = vrot.slane %v100, 4
  %v102 = vadd.f32 %v100, %v101
  %v103 = vrot.slane %v102, 2
  %v104 = vadd.f32 %v102, %v103
  %v105 = vrot.slane %v104, 1
  %v106 = vadd.f32 %v104, %v105
  %v107 = vrcp.pop 32.0
  %v108 = vmul.f32 %v67, %v107
  %v109 = vmul.f32 %v80, %v107
  %v110 = vmul.f32 %v93, %v107
  %v111 = vmul.f32 %v106, %v107
  %v112 = vmul.f32 %v108, %v108
  %v113 = vmul.f32 %v109, %v109
  %v114 = vmul.f32 %v110, %v110
  %v115 = vmul.f32 %v111, %v111
  %vm120 = vcmask 1041409
  %v121 = vsel %vm120, %v113, %v112
  %vm122 = vcmask 1042434
  %v123 = vsel %vm122, %v114, %v121
  %vm124 = vcmask 1043459
  %v125 = vsel %vm124, %v115, %v123
  %vm127 = vcmask 125952
  %v128 = vsel %vm127, %v125, 0.0
  %129 = vadd.xlane.f32.xlu0 %v128
  %v130 = vpop.xlane.xlu0 %129
  %v131 = vmax.f32 %v130, 1e-24
  %v132 = vrsqrt.pop %v131
  %v134 = vrot.slane %v132, 1
  %v135 = vrot.slane %v132, 2
  %v136 = vrot.slane %v132, 3
  %v141 = vmul.f32 %v108, %v132
  %v142 = vmul.f32 %v109, %v134
  %v143 = vmul.f32 %v110, %v135
  %v144 = vmul.f32 %v111, %v136
  %v145 = vld [vmem:[%s1] sm:$0xff]
  %v146 = vld [vmem:[%s1 + $0x8] sm:$0xff]
  %v147 = vld [vmem:[%s1 + $0x10] sm:$0xff]
  %v148 = vld [vmem:[%s1 + $0x18] sm:$0xff]
  %v149 = vld [vmem:[%s1 + $0x20] sm:$0xff]
  %v150 = vld [vmem:[%s1 + $0x28] sm:$0xff]
  %v151 = vld [vmem:[%s1 + $0x30] sm:$0xff]
  %v152 = vld [vmem:[%s1 + $0x38] sm:$0xff]
  %v153 = vld [vmem:[%s1 + $0x40] sm:$0xff]
  %v154 = vld [vmem:[%s1 + $0x48] sm:$0xff]
  %v155 = vld [vmem:[%s1 + $0x50] sm:$0xff]
  %v156 = vld [vmem:[%s1 + $0x58] sm:$0xff]
  %v157 = vld [vmem:[%s1 + $0x60] sm:$0xff]
  %v158 = vld [vmem:[%s1 + $0x68] sm:$0xff]
  %v159 = vld [vmem:[%s1 + $0x70] sm:$0xff]
  %v160 = vld [vmem:[%s1 + $0x78] sm:$0xff]
  %v161 = vld [vmem:[%s1 + $0x80] sm:$0xff]
  %v162 = vld [vmem:[%s1 + $0x88] sm:$0xff]
  %v163 = vld [vmem:[%s1 + $0x90] sm:$0xff]
  %v164 = vld [vmem:[%s1 + $0x98] sm:$0xff]
  %v165 = vld [vmem:[%s1 + $0xa0] sm:$0xff]
  %v166 = vld [vmem:[%s1 + $0xa8] sm:$0xff]
  %v167 = vld [vmem:[%s1 + $0xb0] sm:$0xff]
  %v168 = vld [vmem:[%s1 + $0xb8] sm:$0xff]
  %v169 = vld [vmem:[%s1 + $0xc0] sm:$0xff]
  %v170 = vld [vmem:[%s1 + $0xc8] sm:$0xff]
  %v171 = vld [vmem:[%s1 + $0xd0] sm:$0xff]
  %v172 = vld [vmem:[%s1 + $0xd8] sm:$0xff]
  %v173 = vld [vmem:[%s1 + $0xe0] sm:$0xff]
  %v174 = vld [vmem:[%s1 + $0xe8] sm:$0xff]
  %v175 = vld [vmem:[%s1 + $0xf0] sm:$0xff]
  %v176 = vld [vmem:[%s1 + $0xf8] sm:$0xff]
  %v177 = vmul.f32 %v145, %v145
  %v178 = vmul.f32 %v146, %v146
  %v179 = vmul.f32 %v147, %v147
  %v180 = vmul.f32 %v148, %v148
  %v181 = vmul.f32 %v149, %v149
  %v182 = vmul.f32 %v150, %v150
  %v183 = vmul.f32 %v151, %v151
  %v184 = vmul.f32 %v152, %v152
  %v185 = vmul.f32 %v153, %v153
  %v186 = vmul.f32 %v154, %v154
  %v187 = vmul.f32 %v155, %v155
  %v188 = vmul.f32 %v156, %v156
  %v189 = vmul.f32 %v157, %v157
  %v190 = vmul.f32 %v158, %v158
  %v191 = vmul.f32 %v159, %v159
  %v192 = vmul.f32 %v160, %v160
  %v193 = vmul.f32 %v161, %v161
  %v194 = vmul.f32 %v162, %v162
  %v195 = vmul.f32 %v163, %v163
  %v196 = vmul.f32 %v164, %v164
  %v197 = vmul.f32 %v165, %v165
  %v198 = vmul.f32 %v166, %v166
  %v199 = vmul.f32 %v167, %v167
  %v200 = vmul.f32 %v168, %v168
  %v201 = vmul.f32 %v169, %v169
  %v202 = vmul.f32 %v170, %v170
  %v203 = vmul.f32 %v171, %v171
  %v204 = vmul.f32 %v172, %v172
  %v205 = vmul.f32 %v173, %v173
  %v206 = vmul.f32 %v174, %v174
  %v207 = vmul.f32 %v175, %v175
  %v208 = vmul.f32 %v176, %v176
  %v209 = vsel %vm54, %v177, 0.0
  %v210 = vsel %vm54, %v178, 0.0
  %v211 = vadd.f32 %v209, %v210
  %v212 = vsel %vm54, %v179, 0.0
  %v213 = vadd.f32 %v211, %v212
  %v214 = vsel %vm54, %v180, 0.0
  %v215 = vadd.f32 %v213, %v214
  %v216 = vsel %vm54, %v181, 0.0
  %v217 = vadd.f32 %v215, %v216
  %v218 = vsel %vm54, %v182, 0.0
  %v219 = vadd.f32 %v217, %v218
  %v220 = vsel %vm54, %v183, 0.0
  %v221 = vadd.f32 %v219, %v220
  %v222 = vsel %vm54, %v184, 0.0
  %v223 = vadd.f32 %v221, %v222
  %v224 = vrot.slane %v223, 4
  %v225 = vadd.f32 %v223, %v224
  %v226 = vrot.slane %v225, 2
  %v227 = vadd.f32 %v225, %v226
  %v228 = vrot.slane %v227, 1
  %v229 = vadd.f32 %v227, %v228
  %v230 = vsel %vm54, %v185, 0.0
  %v231 = vsel %vm54, %v186, 0.0
  %v232 = vadd.f32 %v230, %v231
  %v233 = vsel %vm54, %v187, 0.0
  %v234 = vadd.f32 %v232, %v233
  %v235 = vsel %vm54, %v188, 0.0
  %v236 = vadd.f32 %v234, %v235
  %v237 = vsel %vm54, %v189, 0.0
  %v238 = vadd.f32 %v236, %v237
  %v239 = vsel %vm54, %v190, 0.0
  %v240 = vadd.f32 %v238, %v239
  %v241 = vsel %vm54, %v191, 0.0
  %v242 = vadd.f32 %v240, %v241
  %v243 = vsel %vm54, %v192, 0.0
  %v244 = vadd.f32 %v242, %v243
  %v245 = vrot.slane %v244, 4
  %v246 = vadd.f32 %v244, %v245
  %v247 = vrot.slane %v246, 2
  %v248 = vadd.f32 %v246, %v247
  %v249 = vrot.slane %v248, 1
  %v250 = vadd.f32 %v248, %v249
  %v251 = vsel %vm54, %v193, 0.0
  %v252 = vsel %vm54, %v194, 0.0
  %v253 = vadd.f32 %v251, %v252
  %v254 = vsel %vm54, %v195, 0.0
  %v255 = vadd.f32 %v253, %v254
  %v256 = vsel %vm54, %v196, 0.0
  %v257 = vadd.f32 %v255, %v256
  %v258 = vsel %vm54, %v197, 0.0
  %v259 = vadd.f32 %v257, %v258
  %v260 = vsel %vm54, %v198, 0.0
  %v261 = vadd.f32 %v259, %v260
  %v262 = vsel %vm54, %v199, 0.0
  %v263 = vadd.f32 %v261, %v262
  %v264 = vsel %vm54, %v200, 0.0
  %v265 = vadd.f32 %v263, %v264
  %v266 = vrot.slane %v265, 4
  %v267 = vadd.f32 %v265, %v266
  %v268 = vrot.slane %v267, 2
  %v269 = vadd.f32 %v267, %v268
  %v270 = vrot.slane %v269, 1
  %v271 = vadd.f32 %v269, %v270
  %v272 = vsel %vm54, %v201, 0.0
  %v273 = vsel %vm54, %v202, 0.0
  %v274 = vadd.f32 %v272, %v273
  %v275 = vsel %vm54, %v203, 0.0
  %v276 = vadd.f32 %v274, %v275
  %v277 = vsel %vm54, %v204, 0.0
  %v278 = vadd.f32 %v276, %v277
  %v279 = vsel %vm54, %v205, 0.0
  %v280 = vadd.f32 %v278, %v279
  %v281 = vsel %vm54, %v206, 0.0
  %v282 = vadd.f32 %v280, %v281
  %v283 = vsel %vm54, %v207, 0.0
  %v284 = vadd.f32 %v282, %v283
  %v285 = vsel %vm54, %v208, 0.0
  %v286 = vadd.f32 %v284, %v285
  %v287 = vrot.slane %v286, 4
  %v288 = vadd.f32 %v286, %v287
  %v289 = vrot.slane %v288, 2
  %v290 = vadd.f32 %v288, %v289
  %v291 = vrot.slane %v290, 1
  %v292 = vadd.f32 %v290, %v291
  %v293 = vrcp.pop 64.0
  %v294 = vmul.f32 %v229, %v293
  %v295 = vmul.f32 %v250, %v293
  %v296 = vmul.f32 %v271, %v293
  %v297 = vmul.f32 %v292, %v293
  %v298 = vmul.f32 %v294, %v294
  %v299 = vmul.f32 %v295, %v295
  %v300 = vmul.f32 %v296, %v296
  %v301 = vmul.f32 %v297, %v297
  %v306 = vsel %vm120, %v299, %v298
  %v307 = vsel %vm122, %v300, %v306
  %v308 = vsel %vm124, %v301, %v307
  %v310 = vsel %vm127, %v308, 0.0
  %311 = vadd.xlane.f32.xlu0 %v310
  %v312 = vpop.xlane.xlu0 %311
  %v313 = vmax.f32 %v312, 1e-24
  %v314 = vrsqrt.pop %v313
  %v316 = vrot.slane %v314, 1
  %v317 = vrot.slane %v314, 2
  %v318 = vrot.slane %v314, 3
  %v323 = vmul.f32 %v294, %v314
  %v324 = vmul.f32 %v295, %v316
  %v325 = vmul.f32 %v296, %v317
  %v326 = vmul.f32 %v297, %v318
  %v327 = vld [vmem:[%s2] sm:$0xff]
  %v328 = vld [vmem:[%s2 + $0x8] sm:$0xff]
  %v329 = vld [vmem:[%s2 + $0x10] sm:$0xff]
  %v330 = vld [vmem:[%s2 + $0x18] sm:$0xff]
  %v331 = vld [vmem:[%s2 + $0x20] sm:$0xff]
  %v332 = vld [vmem:[%s2 + $0x28] sm:$0xff]
  %v333 = vld [vmem:[%s2 + $0x30] sm:$0xff]
  %v334 = vld [vmem:[%s2 + $0x38] sm:$0xff]
  %v335 = vld [vmem:[%s2 + $0x40] sm:$0xff]
  %v336 = vld [vmem:[%s2 + $0x48] sm:$0xff]
  %v337 = vld [vmem:[%s2 + $0x50] sm:$0xff]
  %v338 = vld [vmem:[%s2 + $0x58] sm:$0xff]
  %v339 = vld [vmem:[%s2 + $0x60] sm:$0xff]
  %v340 = vld [vmem:[%s2 + $0x68] sm:$0xff]
  %v341 = vld [vmem:[%s2 + $0x70] sm:$0xff]
  %v342 = vld [vmem:[%s2 + $0x78] sm:$0xff]
  %v343 = vld [vmem:[%s2 + $0x80] sm:$0xff]
  %v344 = vld [vmem:[%s2 + $0x88] sm:$0xff]
  %v345 = vld [vmem:[%s2 + $0x90] sm:$0xff]
  %v346 = vld [vmem:[%s2 + $0x98] sm:$0xff]
  %v347 = vld [vmem:[%s2 + $0xa0] sm:$0xff]
  %v348 = vld [vmem:[%s2 + $0xa8] sm:$0xff]
  %v349 = vld [vmem:[%s2 + $0xb0] sm:$0xff]
  %v350 = vld [vmem:[%s2 + $0xb8] sm:$0xff]
  %v351 = vld [vmem:[%s2 + $0xc0] sm:$0xff]
  %v352 = vld [vmem:[%s2 + $0xc8] sm:$0xff]
  %v353 = vld [vmem:[%s2 + $0xd0] sm:$0xff]
  %v354 = vld [vmem:[%s2 + $0xd8] sm:$0xff]
  %v355 = vld [vmem:[%s2 + $0xe0] sm:$0xff]
  %v356 = vld [vmem:[%s2 + $0xe8] sm:$0xff]
  %v357 = vld [vmem:[%s2 + $0xf0] sm:$0xff]
  %v358 = vld [vmem:[%s2 + $0xf8] sm:$0xff]
  %v359 = vld [vmem:[%s2 + $0x100] sm:$0xff]
  %v360 = vld [vmem:[%s2 + $0x108] sm:$0xff]
  %v361 = vld [vmem:[%s2 + $0x110] sm:$0xff]
  %v362 = vld [vmem:[%s2 + $0x118] sm:$0xff]
  %v363 = vld [vmem:[%s2 + $0x120] sm:$0xff]
  %v364 = vld [vmem:[%s2 + $0x128] sm:$0xff]
  %v365 = vld [vmem:[%s2 + $0x130] sm:$0xff]
  %v366 = vld [vmem:[%s2 + $0x138] sm:$0xff]
  %v367 = vld [vmem:[%s2 + $0x140] sm:$0xff]
  %v368 = vld [vmem:[%s2 + $0x148] sm:$0xff]
  %v369 = vld [vmem:[%s2 + $0x150] sm:$0xff]
  %v370 = vld [vmem:[%s2 + $0x158] sm:$0xff]
  %v371 = vld [vmem:[%s2 + $0x160] sm:$0xff]
  %v372 = vld [vmem:[%s2 + $0x168] sm:$0xff]
  %v373 = vld [vmem:[%s2 + $0x170] sm:$0xff]
  %v374 = vld [vmem:[%s2 + $0x178] sm:$0xff]
  %v375 = vld [vmem:[%s2 + $0x180] sm:$0xff]
  %v376 = vld [vmem:[%s2 + $0x188] sm:$0xff]
  %v377 = vld [vmem:[%s2 + $0x190] sm:$0xff]
  %v378 = vld [vmem:[%s2 + $0x198] sm:$0xff]
  %v379 = vld [vmem:[%s2 + $0x1a0] sm:$0xff]
  %v380 = vld [vmem:[%s2 + $0x1a8] sm:$0xff]
  %v381 = vld [vmem:[%s2 + $0x1b0] sm:$0xff]
  %v382 = vld [vmem:[%s2 + $0x1b8] sm:$0xff]
  %v383 = vld [vmem:[%s2 + $0x1c0] sm:$0xff]
  %v384 = vld [vmem:[%s2 + $0x1c8] sm:$0xff]
  %v385 = vld [vmem:[%s2 + $0x1d0] sm:$0xff]
  %v386 = vld [vmem:[%s2 + $0x1d8] sm:$0xff]
  %v387 = vld [vmem:[%s2 + $0x1e0] sm:$0xff]
  %v388 = vld [vmem:[%s2 + $0x1e8] sm:$0xff]
  %v389 = vld [vmem:[%s2 + $0x1f0] sm:$0xff]
  %v390 = vld [vmem:[%s2 + $0x1f8] sm:$0xff]
  %v391 = vmul.f32 %v327, %v327
  %v392 = vmul.f32 %v328, %v328
  %v393 = vmul.f32 %v329, %v329
  %v394 = vmul.f32 %v330, %v330
  %v395 = vmul.f32 %v331, %v331
  %v396 = vmul.f32 %v332, %v332
  %v397 = vmul.f32 %v333, %v333
  %v398 = vmul.f32 %v334, %v334
  %v399 = vmul.f32 %v335, %v335
  %v400 = vmul.f32 %v336, %v336
  %v401 = vmul.f32 %v337, %v337
  %v402 = vmul.f32 %v338, %v338
  %v403 = vmul.f32 %v339, %v339
  %v404 = vmul.f32 %v340, %v340
  %v405 = vmul.f32 %v341, %v341
  %v406 = vmul.f32 %v342, %v342
  %v407 = vmul.f32 %v343, %v343
  %v408 = vmul.f32 %v344, %v344
  %v409 = vmul.f32 %v345, %v345
  %v410 = vmul.f32 %v346, %v346
  %v411 = vmul.f32 %v347, %v347
  %v412 = vmul.f32 %v348, %v348
  %v413 = vmul.f32 %v349, %v349
  %v414 = vmul.f32 %v350, %v350
  %v415 = vmul.f32 %v351, %v351
  %v416 = vmul.f32 %v352, %v352
  %v417 = vmul.f32 %v353, %v353
  %v418 = vmul.f32 %v354, %v354
  %v419 = vmul.f32 %v355, %v355
  %v420 = vmul.f32 %v356, %v356
  %v421 = vmul.f32 %v357, %v357
  %v422 = vmul.f32 %v358, %v358
  %v423 = vmul.f32 %v359, %v359
  %v424 = vmul.f32 %v360, %v360
  %v425 = vmul.f32 %v361, %v361
  %v426 = vmul.f32 %v362, %v362
  %v427 = vmul.f32 %v363, %v363
  %v428 = vmul.f32 %v364, %v364
  %v429 = vmul.f32 %v365, %v365
  %v430 = vmul.f32 %v366, %v366
  %v431 = vmul.f32 %v367, %v367
  %v432 = vmul.f32 %v368, %v368
  %v433 = vmul.f32 %v369, %v369
  %v434 = vmul.f32 %v370, %v370
  %v435 = vmul.f32 %v371, %v371
  %v436 = vmul.f32 %v372, %v372
  %v437 = vmul.f32 %v373, %v373
  %v438 = vmul.f32 %v374, %v374
  %v439 = vmul.f32 %v375, %v375
  %v440 = vmul.f32 %v376, %v376
  %v441 = vmul.f32 %v377, %v377
  %v442 = vmul.f32 %v378, %v378
  %v443 = vmul.f32 %v379, %v379
  %v444 = vmul.f32 %v380, %v380
  %v445 = vmul.f32 %v381, %v381
  %v446 = vmul.f32 %v382, %v382
  %v447 = vmul.f32 %v383, %v383
  %v448 = vmul.f32 %v384, %v384
  %v449 = vmul.f32 %v385, %v385
  %v450 = vmul.f32 %v386, %v386
  %v451 = vmul.f32 %v387, %v387
  %v452 = vmul.f32 %v388, %v388
  %v453 = vmul.f32 %v389, %v389
  %v454 = vmul.f32 %v390, %v390
  %v455 = vsel %vm54, %v391, 0.0
  %v456 = vsel %vm54, %v392, 0.0
  %v457 = vadd.f32 %v455, %v456
  %v458 = vsel %vm54, %v393, 0.0
  %v459 = vadd.f32 %v457, %v458
  %v460 = vsel %vm54, %v394, 0.0
  %v461 = vadd.f32 %v459, %v460
  %v462 = vsel %vm54, %v395, 0.0
  %v463 = vadd.f32 %v461, %v462
  %v464 = vsel %vm54, %v396, 0.0
  %v465 = vadd.f32 %v463, %v464
  %v466 = vsel %vm54, %v397, 0.0
  %v467 = vadd.f32 %v465, %v466
  %v468 = vsel %vm54, %v398, 0.0
  %v469 = vadd.f32 %v467, %v468
  %v470 = vsel %vm54, %v399, 0.0
  %v471 = vadd.f32 %v469, %v470
  %v472 = vsel %vm54, %v400, 0.0
  %v473 = vadd.f32 %v471, %v472
  %v474 = vsel %vm54, %v401, 0.0
  %v475 = vadd.f32 %v473, %v474
  %v476 = vsel %vm54, %v402, 0.0
  %v477 = vadd.f32 %v475, %v476
  %v478 = vsel %vm54, %v403, 0.0
  %v479 = vadd.f32 %v477, %v478
  %v480 = vsel %vm54, %v404, 0.0
  %v481 = vadd.f32 %v479, %v480
  %v482 = vsel %vm54, %v405, 0.0
  %v483 = vadd.f32 %v481, %v482
  %v484 = vsel %vm54, %v406, 0.0
  %v485 = vadd.f32 %v483, %v484
  %v486 = vrot.slane %v485, 4
  %v487 = vadd.f32 %v485, %v486
  %v488 = vrot.slane %v487, 2
  %v489 = vadd.f32 %v487, %v488
  %v490 = vrot.slane %v489, 1
  %v491 = vadd.f32 %v489, %v490
  %v492 = vsel %vm54, %v407, 0.0
  %v493 = vsel %vm54, %v408, 0.0
  %v494 = vadd.f32 %v492, %v493
  %v495 = vsel %vm54, %v409, 0.0
  %v496 = vadd.f32 %v494, %v495
  %v497 = vsel %vm54, %v410, 0.0
  %v498 = vadd.f32 %v496, %v497
  %v499 = vsel %vm54, %v411, 0.0
  %v500 = vadd.f32 %v498, %v499
  %v501 = vsel %vm54, %v412, 0.0
  %v502 = vadd.f32 %v500, %v501
  %v503 = vsel %vm54, %v413, 0.0
  %v504 = vadd.f32 %v502, %v503
  %v505 = vsel %vm54, %v414, 0.0
  %v506 = vadd.f32 %v504, %v505
  %v507 = vsel %vm54, %v415, 0.0
  %v508 = vadd.f32 %v506, %v507
  %v509 = vsel %vm54, %v416, 0.0
  %v510 = vadd.f32 %v508, %v509
  %v511 = vsel %vm54, %v417, 0.0
  %v512 = vadd.f32 %v510, %v511
  %v513 = vsel %vm54, %v418, 0.0
  %v514 = vadd.f32 %v512, %v513
  %v515 = vsel %vm54, %v419, 0.0
  %v516 = vadd.f32 %v514, %v515
  %v517 = vsel %vm54, %v420, 0.0
  %v518 = vadd.f32 %v516, %v517
  %v519 = vsel %vm54, %v421, 0.0
  %v520 = vadd.f32 %v518, %v519
  %v521 = vsel %vm54, %v422, 0.0
  %v522 = vadd.f32 %v520, %v521
  %v523 = vrot.slane %v522, 4
  %v524 = vadd.f32 %v522, %v523
  %v525 = vrot.slane %v524, 2
  %v526 = vadd.f32 %v524, %v525
  %v527 = vrot.slane %v526, 1
  %v528 = vadd.f32 %v526, %v527
  %v529 = vsel %vm54, %v423, 0.0
  %v530 = vsel %vm54, %v424, 0.0
  %v531 = vadd.f32 %v529, %v530
  %v532 = vsel %vm54, %v425, 0.0
  %v533 = vadd.f32 %v531, %v532
  %v534 = vsel %vm54, %v426, 0.0
  %v535 = vadd.f32 %v533, %v534
  %v536 = vsel %vm54, %v427, 0.0
  %v537 = vadd.f32 %v535, %v536
  %v538 = vsel %vm54, %v428, 0.0
  %v539 = vadd.f32 %v537, %v538
  %v540 = vsel %vm54, %v429, 0.0
  %v541 = vadd.f32 %v539, %v540
  %v542 = vsel %vm54, %v430, 0.0
  %v543 = vadd.f32 %v541, %v542
  %v544 = vsel %vm54, %v431, 0.0
  %v545 = vadd.f32 %v543, %v544
  %v546 = vsel %vm54, %v432, 0.0
  %v547 = vadd.f32 %v545, %v546
  %v548 = vsel %vm54, %v433, 0.0
  %v549 = vadd.f32 %v547, %v548
  %v550 = vsel %vm54, %v434, 0.0
  %v551 = vadd.f32 %v549, %v550
  %v552 = vsel %vm54, %v435, 0.0
  %v553 = vadd.f32 %v551, %v552
  %v554 = vsel %vm54, %v436, 0.0
  %v555 = vadd.f32 %v553, %v554
  %v556 = vsel %vm54, %v437, 0.0
  %v557 = vadd.f32 %v555, %v556
  %v558 = vsel %vm54, %v438, 0.0
  %v559 = vadd.f32 %v557, %v558
  %v560 = vrot.slane %v559, 4
  %v561 = vadd.f32 %v559, %v560
  %v562 = vrot.slane %v561, 2
  %v563 = vadd.f32 %v561, %v562
  %v564 = vrot.slane %v563, 1
  %v565 = vadd.f32 %v563, %v564
  %v566 = vsel %vm54, %v439, 0.0
  %v567 = vsel %vm54, %v440, 0.0
  %v568 = vadd.f32 %v566, %v567
  %v569 = vsel %vm54, %v441, 0.0
  %v570 = vadd.f32 %v568, %v569
  %v571 = vsel %vm54, %v442, 0.0
  %v572 = vadd.f32 %v570, %v571
  %v573 = vsel %vm54, %v443, 0.0
  %v574 = vadd.f32 %v572, %v573
  %v575 = vsel %vm54, %v444, 0.0
  %v576 = vadd.f32 %v574, %v575
  %v577 = vsel %vm54, %v445, 0.0
  %v578 = vadd.f32 %v576, %v577
  %v579 = vsel %vm54, %v446, 0.0
  %v580 = vadd.f32 %v578, %v579
  %v581 = vsel %vm54, %v447, 0.0
  %v582 = vadd.f32 %v580, %v581
  %v583 = vsel %vm54, %v448, 0.0
  %v584 = vadd.f32 %v582, %v583
  %v585 = vsel %vm54, %v449, 0.0
  %v586 = vadd.f32 %v584, %v585
  %v587 = vsel %vm54, %v450, 0.0
  %v588 = vadd.f32 %v586, %v587
  %v589 = vsel %vm54, %v451, 0.0
  %v590 = vadd.f32 %v588, %v589
  %v591 = vsel %vm54, %v452, 0.0
  %v592 = vadd.f32 %v590, %v591
  %v593 = vsel %vm54, %v453, 0.0
  %v594 = vadd.f32 %v592, %v593
  %v595 = vsel %vm54, %v454, 0.0
  %v596 = vadd.f32 %v594, %v595
  %v597 = vrot.slane %v596, 4
  %v598 = vadd.f32 %v596, %v597
  %v599 = vrot.slane %v598, 2
  %v600 = vadd.f32 %v598, %v599
  %v601 = vrot.slane %v600, 1
  %v602 = vadd.f32 %v600, %v601
  %v603 = vrcp.pop 128.0
  %v604 = vmul.f32 %v491, %v603
  %v605 = vmul.f32 %v528, %v603
  %v606 = vmul.f32 %v565, %v603
  %v607 = vmul.f32 %v602, %v603
  %v608 = vmul.f32 %v604, %v604
  %v609 = vmul.f32 %v605, %v605
  %v610 = vmul.f32 %v606, %v606
  %v611 = vmul.f32 %v607, %v607
  %v616 = vsel %vm120, %v609, %v608
  %v617 = vsel %vm122, %v610, %v616
  %v618 = vsel %vm124, %v611, %v617
  %v620 = vsel %vm127, %v618, 0.0
  %621 = vadd.xlane.f32.xlu0 %v620
  %v622 = vpop.xlane.xlu0 %621
  %v623 = vmax.f32 %v622, 1e-24
  %v624 = vrsqrt.pop %v623
  %v626 = vrot.slane %v624, 1
  %v627 = vrot.slane %v624, 2
  %v628 = vrot.slane %v624, 3
  %v633 = vmul.f32 %v604, %v624
  %v634 = vmul.f32 %v605, %v626
  %v635 = vmul.f32 %v606, %v627
  %v636 = vmul.f32 %v607, %v628
  %v641 = vrot.slane %v323, 7
  %v642 = vrot.slane %v324, 7
  %v643 = vrot.slane %v325, 7
  %v644 = vrot.slane %v326, 7
  %v653 = vrot.slane %v633, 6
  %v654 = vrot.slane %v634, 6
  %v655 = vrot.slane %v635, 6
  %v656 = vrot.slane %v636, 6
  %vm661 = vcmask 1040384
  %v662 = vsel %vm661, %v141, %v641
  %v663 = vsel %vm661, %v142, %v642
  %v664 = vsel %vm661, %v143, %v643
  %v665 = vsel %vm661, %v144, %v644
  %vm666 = vcmask 1041408
  %v667 = vsel %vm666, %v662, %v653
  %v668 = vsel %vm666, %v663, %v654
  %v669 = vsel %vm666, %v664, %v655
  %v670 = vsel %vm666, %v665, %v656
  %vm671 = vcmask 124928
  %672 = vst.msk [vmem:[%s6] sm:$0x7] %vm671, %v667
  %673 = vst.msk [vmem:[%s6 + $0x4] sm:$0x7] %vm671, %v668
  %674 = vst.msk [vmem:[%s6 + $0x8] sm:$0x7] %vm671, %v669
  %675 = vst.msk [vmem:[%s6 + $0xc] sm:$0x7] %vm671, %v670
  %v676 = vadd.f32 %v141, %v323
  %v677 = vadd.f32 %v142, %v324
  %v678 = vadd.f32 %v143, %v325
  %v679 = vadd.f32 %v144, %v326
  %v680 = vadd.f32 %v676, %v633
  %v681 = vadd.f32 %v677, %v634
  %v682 = vadd.f32 %v678, %v635
  %v683 = vadd.f32 %v679, %v636
  %v684 = vld [vmem:[%s2] sm:$0xff]
  %v685 = vld [vmem:[%s2 + $0x8] sm:$0xff]
  %v686 = vld [vmem:[%s2 + $0x10] sm:$0xff]
  %v687 = vld [vmem:[%s2 + $0x18] sm:$0xff]
  %v688 = vld [vmem:[%s2 + $0x20] sm:$0xff]
  %v689 = vld [vmem:[%s2 + $0x28] sm:$0xff]
  %v690 = vld [vmem:[%s2 + $0x30] sm:$0xff]
  %v691 = vld [vmem:[%s2 + $0x38] sm:$0xff]
  %v692 = vld [vmem:[%s2 + $0x40] sm:$0xff]
  %v693 = vld [vmem:[%s2 + $0x48] sm:$0xff]
  %v694 = vld [vmem:[%s2 + $0x50] sm:$0xff]
  %v695 = vld [vmem:[%s2 + $0x58] sm:$0xff]
  %v696 = vld [vmem:[%s2 + $0x60] sm:$0xff]
  %v697 = vld [vmem:[%s2 + $0x68] sm:$0xff]
  %v698 = vld [vmem:[%s2 + $0x70] sm:$0xff]
  %v699 = vld [vmem:[%s2 + $0x78] sm:$0xff]
  %v700 = vld [vmem:[%s2 + $0x80] sm:$0xff]
  %v701 = vld [vmem:[%s2 + $0x88] sm:$0xff]
  %v702 = vld [vmem:[%s2 + $0x90] sm:$0xff]
  %v703 = vld [vmem:[%s2 + $0x98] sm:$0xff]
  %v704 = vld [vmem:[%s2 + $0xa0] sm:$0xff]
  %v705 = vld [vmem:[%s2 + $0xa8] sm:$0xff]
  %v706 = vld [vmem:[%s2 + $0xb0] sm:$0xff]
  %v707 = vld [vmem:[%s2 + $0xb8] sm:$0xff]
  %v708 = vld [vmem:[%s2 + $0xc0] sm:$0xff]
  %v709 = vld [vmem:[%s2 + $0xc8] sm:$0xff]
  %v710 = vld [vmem:[%s2 + $0xd0] sm:$0xff]
  %v711 = vld [vmem:[%s2 + $0xd8] sm:$0xff]
  %v712 = vld [vmem:[%s2 + $0xe0] sm:$0xff]
  %v713 = vld [vmem:[%s2 + $0xe8] sm:$0xff]
  %v714 = vld [vmem:[%s2 + $0xf0] sm:$0xff]
  %v715 = vld [vmem:[%s2 + $0xf8] sm:$0xff]
  %v716 = vld [vmem:[%s2 + $0x100] sm:$0xff]
  %v717 = vld [vmem:[%s2 + $0x108] sm:$0xff]
  %v718 = vld [vmem:[%s2 + $0x110] sm:$0xff]
  %v719 = vld [vmem:[%s2 + $0x118] sm:$0xff]
  %v720 = vld [vmem:[%s2 + $0x120] sm:$0xff]
  %v721 = vld [vmem:[%s2 + $0x128] sm:$0xff]
  %v722 = vld [vmem:[%s2 + $0x130] sm:$0xff]
  %v723 = vld [vmem:[%s2 + $0x138] sm:$0xff]
  %v724 = vld [vmem:[%s2 + $0x140] sm:$0xff]
  %v725 = vld [vmem:[%s2 + $0x148] sm:$0xff]
  %v726 = vld [vmem:[%s2 + $0x150] sm:$0xff]
  %v727 = vld [vmem:[%s2 + $0x158] sm:$0xff]
  %v728 = vld [vmem:[%s2 + $0x160] sm:$0xff]
  %v729 = vld [vmem:[%s2 + $0x168] sm:$0xff]
  %v730 = vld [vmem:[%s2 + $0x170] sm:$0xff]
  %v731 = vld [vmem:[%s2 + $0x178] sm:$0xff]
  %v732 = vld [vmem:[%s2 + $0x180] sm:$0xff]
  %v733 = vld [vmem:[%s2 + $0x188] sm:$0xff]
  %v734 = vld [vmem:[%s2 + $0x190] sm:$0xff]
  %v735 = vld [vmem:[%s2 + $0x198] sm:$0xff]
  %v736 = vld [vmem:[%s2 + $0x1a0] sm:$0xff]
  %v737 = vld [vmem:[%s2 + $0x1a8] sm:$0xff]
  %v738 = vld [vmem:[%s2 + $0x1b0] sm:$0xff]
  %v739 = vld [vmem:[%s2 + $0x1b8] sm:$0xff]
  %v740 = vld [vmem:[%s2 + $0x1c0] sm:$0xff]
  %v741 = vld [vmem:[%s2 + $0x1c8] sm:$0xff]
  %v742 = vld [vmem:[%s2 + $0x1d0] sm:$0xff]
  %v743 = vld [vmem:[%s2 + $0x1d8] sm:$0xff]
  %v744 = vld [vmem:[%s2 + $0x1e0] sm:$0xff]
  %v745 = vld [vmem:[%s2 + $0x1e8] sm:$0xff]
  %v746 = vld [vmem:[%s2 + $0x1f0] sm:$0xff]
  %v747 = vld [vmem:[%s2 + $0x1f8] sm:$0xff]
  %v748 = vlaneseq
  %v749 = vshrl.u32 %v748, 7
  %v750 = vsub.s32 0, %v749
  %v751 = vrot.slane %v680, %v750
  %v752 = vlaneseq
  %v753 = vshrl.u32 %v752, 7
  %v754 = vsub.s32 0, %v753
  %v755 = vrot.slane %v681, %v754
  %v756 = vlaneseq
  %v757 = vshrl.u32 %v756, 7
  %v758 = vsub.s32 0, %v757
  %v759 = vrot.slane %v682, %v758
  %v760 = vlaneseq
  %v761 = vshrl.u32 %v760, 7
  %v762 = vsub.s32 0, %v761
  %v763 = vrot.slane %v683, %v762
  %v764 = vmul.f32 %v684, %v751
  %v765 = vmul.f32 %v685, %v751
  %v766 = vmul.f32 %v686, %v751
  %v767 = vmul.f32 %v687, %v751
  %v768 = vmul.f32 %v688, %v751
  %v769 = vmul.f32 %v689, %v751
  %v770 = vmul.f32 %v690, %v751
  %v771 = vmul.f32 %v691, %v751
  %v772 = vmul.f32 %v692, %v751
  %v773 = vmul.f32 %v693, %v751
  %v774 = vmul.f32 %v694, %v751
  %v775 = vmul.f32 %v695, %v751
  %v776 = vmul.f32 %v696, %v751
  %v777 = vmul.f32 %v697, %v751
  %v778 = vmul.f32 %v698, %v751
  %v779 = vmul.f32 %v699, %v751
  %v780 = vmul.f32 %v700, %v755
  %v781 = vmul.f32 %v701, %v755
  %v782 = vmul.f32 %v702, %v755
  %v783 = vmul.f32 %v703, %v755
  %v784 = vmul.f32 %v704, %v755
  %v785 = vmul.f32 %v705, %v755
  %v786 = vmul.f32 %v706, %v755
  %v787 = vmul.f32 %v707, %v755
  %v788 = vmul.f32 %v708, %v755
  %v789 = vmul.f32 %v709, %v755
  %v790 = vmul.f32 %v710, %v755
  %v791 = vmul.f32 %v711, %v755
  %v792 = vmul.f32 %v712, %v755
  %v793 = vmul.f32 %v713, %v755
  %v794 = vmul.f32 %v714, %v755
  %v795 = vmul.f32 %v715, %v755
  %v796 = vmul.f32 %v716, %v759
  %v797 = vmul.f32 %v717, %v759
  %v798 = vmul.f32 %v718, %v759
  %v799 = vmul.f32 %v719, %v759
  %v800 = vmul.f32 %v720, %v759
  %v801 = vmul.f32 %v721, %v759
  %v802 = vmul.f32 %v722, %v759
  %v803 = vmul.f32 %v723, %v759
  %v804 = vmul.f32 %v724, %v759
  %v805 = vmul.f32 %v725, %v759
  %v806 = vmul.f32 %v726, %v759
  %v807 = vmul.f32 %v727, %v759
  %v808 = vmul.f32 %v728, %v759
  %v809 = vmul.f32 %v729, %v759
  %v810 = vmul.f32 %v730, %v759
  %v811 = vmul.f32 %v731, %v759
  %v812 = vmul.f32 %v732, %v763
  %v813 = vmul.f32 %v733, %v763
  %v814 = vmul.f32 %v734, %v763
  %v815 = vmul.f32 %v735, %v763
  %v816 = vmul.f32 %v736, %v763
  %v817 = vmul.f32 %v737, %v763
  %v818 = vmul.f32 %v738, %v763
  %v819 = vmul.f32 %v739, %v763
  %v820 = vmul.f32 %v740, %v763
  %v821 = vmul.f32 %v741, %v763
  %v822 = vmul.f32 %v742, %v763
  %v823 = vmul.f32 %v743, %v763
  %v824 = vmul.f32 %v744, %v763
  %v825 = vmul.f32 %v745, %v763
  %v826 = vmul.f32 %v746, %v763
  %v827 = vmul.f32 %v747, %v763
  %v828 = vsel %vm54, %v764, 0.0
  %829 = vadd.xlane.f32.xlu0 %v828
  %v830 = vpop.xlane.xlu0 %829
  %v831 = vsel %vm54, %v765, 0.0
  %832 = vadd.xlane.f32.xlu0 %v831
  %v833 = vpop.xlane.xlu0 %832
  %v834 = vsel %vm54, %v766, 0.0
  %835 = vadd.xlane.f32.xlu0 %v834
  %v836 = vpop.xlane.xlu0 %835
  %v837 = vsel %vm54, %v767, 0.0
  %838 = vadd.xlane.f32.xlu0 %v837
  %v839 = vpop.xlane.xlu0 %838
  %v840 = vsel %vm54, %v768, 0.0
  %841 = vadd.xlane.f32.xlu0 %v840
  %v842 = vpop.xlane.xlu0 %841
  %v843 = vsel %vm54, %v769, 0.0
  %844 = vadd.xlane.f32.xlu0 %v843
  %v845 = vpop.xlane.xlu0 %844
  %v846 = vsel %vm54, %v770, 0.0
  %847 = vadd.xlane.f32.xlu0 %v846
  %v848 = vpop.xlane.xlu0 %847
  %v849 = vsel %vm54, %v771, 0.0
  %850 = vadd.xlane.f32.xlu0 %v849
  %v851 = vpop.xlane.xlu0 %850
  %v852 = vsel %vm54, %v772, 0.0
  %853 = vadd.xlane.f32.xlu0 %v852
  %v854 = vpop.xlane.xlu0 %853
  %v855 = vsel %vm54, %v773, 0.0
  %856 = vadd.xlane.f32.xlu0 %v855
  %v857 = vpop.xlane.xlu0 %856
  %v858 = vsel %vm54, %v774, 0.0
  %859 = vadd.xlane.f32.xlu0 %v858
  %v860 = vpop.xlane.xlu0 %859
  %v861 = vsel %vm54, %v775, 0.0
  %862 = vadd.xlane.f32.xlu0 %v861
  %v863 = vpop.xlane.xlu0 %862
  %v864 = vsel %vm54, %v776, 0.0
  %865 = vadd.xlane.f32.xlu0 %v864
  %v866 = vpop.xlane.xlu0 %865
  %v867 = vsel %vm54, %v777, 0.0
  %868 = vadd.xlane.f32.xlu0 %v867
  %v869 = vpop.xlane.xlu0 %868
  %v870 = vsel %vm54, %v778, 0.0
  %871 = vadd.xlane.f32.xlu0 %v870
  %v872 = vpop.xlane.xlu0 %871
  %v873 = vsel %vm54, %v779, 0.0
  %874 = vadd.xlane.f32.xlu0 %v873
  %v875 = vpop.xlane.xlu0 %874
  %v876 = vsel %vm54, %v780, 0.0
  %877 = vadd.xlane.f32.xlu0 %v876
  %v878 = vpop.xlane.xlu0 %877
  %v879 = vsel %vm54, %v781, 0.0
  %880 = vadd.xlane.f32.xlu0 %v879
  %v881 = vpop.xlane.xlu0 %880
  %v882 = vsel %vm54, %v782, 0.0
  %883 = vadd.xlane.f32.xlu0 %v882
  %v884 = vpop.xlane.xlu0 %883
  %v885 = vsel %vm54, %v783, 0.0
  %886 = vadd.xlane.f32.xlu0 %v885
  %v887 = vpop.xlane.xlu0 %886
  %v888 = vsel %vm54, %v784, 0.0
  %889 = vadd.xlane.f32.xlu0 %v888
  %v890 = vpop.xlane.xlu0 %889
  %v891 = vsel %vm54, %v785, 0.0
  %892 = vadd.xlane.f32.xlu0 %v891
  %v893 = vpop.xlane.xlu0 %892
  %v894 = vsel %vm54, %v786, 0.0
  %895 = vadd.xlane.f32.xlu0 %v894
  %v896 = vpop.xlane.xlu0 %895
  %v897 = vsel %vm54, %v787, 0.0
  %898 = vadd.xlane.f32.xlu0 %v897
  %v899 = vpop.xlane.xlu0 %898
  %v900 = vsel %vm54, %v788, 0.0
  %901 = vadd.xlane.f32.xlu0 %v900
  %v902 = vpop.xlane.xlu0 %901
  %v903 = vsel %vm54, %v789, 0.0
  %904 = vadd.xlane.f32.xlu0 %v903
  %v905 = vpop.xlane.xlu0 %904
  %v906 = vsel %vm54, %v790, 0.0
  %907 = vadd.xlane.f32.xlu0 %v906
  %v908 = vpop.xlane.xlu0 %907
  %v909 = vsel %vm54, %v791, 0.0
  %910 = vadd.xlane.f32.xlu0 %v909
  %v911 = vpop.xlane.xlu0 %910
  %v912 = vsel %vm54, %v792, 0.0
  %913 = vadd.xlane.f32.xlu0 %v912
  %v914 = vpop.xlane.xlu0 %913
  %v915 = vsel %vm54, %v793, 0.0
  %916 = vadd.xlane.f32.xlu0 %v915
  %v917 = vpop.xlane.xlu0 %916
  %v918 = vsel %vm54, %v794, 0.0
  %919 = vadd.xlane.f32.xlu0 %v918
  %v920 = vpop.xlane.xlu0 %919
  %v921 = vsel %vm54, %v795, 0.0
  %922 = vadd.xlane.f32.xlu0 %v921
  %v923 = vpop.xlane.xlu0 %922
  %v924 = vsel %vm54, %v796, 0.0
  %925 = vadd.xlane.f32.xlu0 %v924
  %v926 = vpop.xlane.xlu0 %925
  %v927 = vsel %vm54, %v797, 0.0
  %928 = vadd.xlane.f32.xlu0 %v927
  %v929 = vpop.xlane.xlu0 %928
  %v930 = vsel %vm54, %v798, 0.0
  %931 = vadd.xlane.f32.xlu0 %v930
  %v932 = vpop.xlane.xlu0 %931
  %v933 = vsel %vm54, %v799, 0.0
  %934 = vadd.xlane.f32.xlu0 %v933
  %v935 = vpop.xlane.xlu0 %934
  %v936 = vsel %vm54, %v800, 0.0
  %937 = vadd.xlane.f32.xlu0 %v936
  %v938 = vpop.xlane.xlu0 %937
  %v939 = vsel %vm54, %v801, 0.0
  %940 = vadd.xlane.f32.xlu0 %v939
  %v941 = vpop.xlane.xlu0 %940
  %v942 = vsel %vm54, %v802, 0.0
  %943 = vadd.xlane.f32.xlu0 %v942
  %v944 = vpop.xlane.xlu0 %943
  %v945 = vsel %vm54, %v803, 0.0
  %946 = vadd.xlane.f32.xlu0 %v945
  %v947 = vpop.xlane.xlu0 %946
  %v948 = vsel %vm54, %v804, 0.0
  %949 = vadd.xlane.f32.xlu0 %v948
  %v950 = vpop.xlane.xlu0 %949
  %v951 = vsel %vm54, %v805, 0.0
  %952 = vadd.xlane.f32.xlu0 %v951
  %v953 = vpop.xlane.xlu0 %952
  %v954 = vsel %vm54, %v806, 0.0
  %955 = vadd.xlane.f32.xlu0 %v954
  %v956 = vpop.xlane.xlu0 %955
  %v957 = vsel %vm54, %v807, 0.0
  %958 = vadd.xlane.f32.xlu0 %v957
  %v959 = vpop.xlane.xlu0 %958
  %v960 = vsel %vm54, %v808, 0.0
  %961 = vadd.xlane.f32.xlu0 %v960
  %v962 = vpop.xlane.xlu0 %961
  %v963 = vsel %vm54, %v809, 0.0
  %964 = vadd.xlane.f32.xlu0 %v963
  %v965 = vpop.xlane.xlu0 %964
  %v966 = vsel %vm54, %v810, 0.0
  %967 = vadd.xlane.f32.xlu0 %v966
  %v968 = vpop.xlane.xlu0 %967
  %v969 = vsel %vm54, %v811, 0.0
  %970 = vadd.xlane.f32.xlu0 %v969
  %v971 = vpop.xlane.xlu0 %970
  %v972 = vsel %vm54, %v812, 0.0
  %973 = vadd.xlane.f32.xlu0 %v972
  %v974 = vpop.xlane.xlu0 %973
  %v975 = vsel %vm54, %v813, 0.0
  %976 = vadd.xlane.f32.xlu0 %v975
  %v977 = vpop.xlane.xlu0 %976
  %v978 = vsel %vm54, %v814, 0.0
  %979 = vadd.xlane.f32.xlu0 %v978
  %v980 = vpop.xlane.xlu0 %979
  %v981 = vsel %vm54, %v815, 0.0
  %982 = vadd.xlane.f32.xlu0 %v981
  %v983 = vpop.xlane.xlu0 %982
  %v984 = vsel %vm54, %v816, 0.0
  %985 = vadd.xlane.f32.xlu0 %v984
  %v986 = vpop.xlane.xlu0 %985
  %v987 = vsel %vm54, %v817, 0.0
  %988 = vadd.xlane.f32.xlu0 %v987
  %v989 = vpop.xlane.xlu0 %988
  %v990 = vsel %vm54, %v818, 0.0
  %991 = vadd.xlane.f32.xlu0 %v990
  %v992 = vpop.xlane.xlu0 %991
  %v993 = vsel %vm54, %v819, 0.0
  %994 = vadd.xlane.f32.xlu0 %v993
  %v995 = vpop.xlane.xlu0 %994
  %v996 = vsel %vm54, %v820, 0.0
  %997 = vadd.xlane.f32.xlu0 %v996
  %v998 = vpop.xlane.xlu0 %997
  %v999 = vsel %vm54, %v821, 0.0
  %1000 = vadd.xlane.f32.xlu0 %v999
  %v1001 = vpop.xlane.xlu0 %1000
  %v1002 = vsel %vm54, %v822, 0.0
  %1003 = vadd.xlane.f32.xlu0 %v1002
  %v1004 = vpop.xlane.xlu0 %1003
  %v1005 = vsel %vm54, %v823, 0.0
  %1006 = vadd.xlane.f32.xlu0 %v1005
  %v1007 = vpop.xlane.xlu0 %1006
  %v1008 = vsel %vm54, %v824, 0.0
  %1009 = vadd.xlane.f32.xlu0 %v1008
  %v1010 = vpop.xlane.xlu0 %1009
  %v1011 = vsel %vm54, %v825, 0.0
  %1012 = vadd.xlane.f32.xlu0 %v1011
  %v1013 = vpop.xlane.xlu0 %1012
  %v1014 = vsel %vm54, %v826, 0.0
  %1015 = vadd.xlane.f32.xlu0 %v1014
  %v1016 = vpop.xlane.xlu0 %1015
  %v1017 = vsel %vm54, %v827, 0.0
  %1018 = vadd.xlane.f32.xlu0 %v1017
  %v1019 = vpop.xlane.xlu0 %1018
  %v1020 = vmul.f32 %v830, 0.0625
  %v1021 = vmul.f32 %v833, 0.0625
  %v1022 = vmul.f32 %v836, 0.0625
  %v1023 = vmul.f32 %v839, 0.0625
  %v1024 = vmul.f32 %v842, 0.0625
  %v1025 = vmul.f32 %v845, 0.0625
  %v1026 = vmul.f32 %v848, 0.0625
  %v1027 = vmul.f32 %v851, 0.0625
  %v1028 = vmul.f32 %v854, 0.0625
  %v1029 = vmul.f32 %v857, 0.0625
  %v1030 = vmul.f32 %v860, 0.0625
  %v1031 = vmul.f32 %v863, 0.0625
  %v1032 = vmul.f32 %v866, 0.0625
  %v1033 = vmul.f32 %v869, 0.0625
  %v1034 = vmul.f32 %v872, 0.0625
  %v1035 = vmul.f32 %v875, 0.0625
  %v1036 = vmul.f32 %v878, 0.0625
  %v1037 = vmul.f32 %v881, 0.0625
  %v1038 = vmul.f32 %v884, 0.0625
  %v1039 = vmul.f32 %v887, 0.0625
  %v1040 = vmul.f32 %v890, 0.0625
  %v1041 = vmul.f32 %v893, 0.0625
  %v1042 = vmul.f32 %v896, 0.0625
  %v1043 = vmul.f32 %v899, 0.0625
  %v1044 = vmul.f32 %v902, 0.0625
  %v1045 = vmul.f32 %v905, 0.0625
  %v1046 = vmul.f32 %v908, 0.0625
  %v1047 = vmul.f32 %v911, 0.0625
  %v1048 = vmul.f32 %v914, 0.0625
  %v1049 = vmul.f32 %v917, 0.0625
  %v1050 = vmul.f32 %v920, 0.0625
  %v1051 = vmul.f32 %v923, 0.0625
  %v1052 = vmul.f32 %v926, 0.0625
  %v1053 = vmul.f32 %v929, 0.0625
  %v1054 = vmul.f32 %v932, 0.0625
  %v1055 = vmul.f32 %v935, 0.0625
  %v1056 = vmul.f32 %v938, 0.0625
  %v1057 = vmul.f32 %v941, 0.0625
  %v1058 = vmul.f32 %v944, 0.0625
  %v1059 = vmul.f32 %v947, 0.0625
  %v1060 = vmul.f32 %v950, 0.0625
  %v1061 = vmul.f32 %v953, 0.0625
  %v1062 = vmul.f32 %v956, 0.0625
  %v1063 = vmul.f32 %v959, 0.0625
  %v1064 = vmul.f32 %v962, 0.0625
  %v1065 = vmul.f32 %v965, 0.0625
  %v1066 = vmul.f32 %v968, 0.0625
  %v1067 = vmul.f32 %v971, 0.0625
  %v1068 = vmul.f32 %v974, 0.0625
  %v1069 = vmul.f32 %v977, 0.0625
  %v1070 = vmul.f32 %v980, 0.0625
  %v1071 = vmul.f32 %v983, 0.0625
  %v1072 = vmul.f32 %v986, 0.0625
  %v1073 = vmul.f32 %v989, 0.0625
  %v1074 = vmul.f32 %v992, 0.0625
  %v1075 = vmul.f32 %v995, 0.0625
  %v1076 = vmul.f32 %v998, 0.0625
  %v1077 = vmul.f32 %v1001, 0.0625
  %v1078 = vmul.f32 %v1004, 0.0625
  %v1079 = vmul.f32 %v1007, 0.0625
  %v1080 = vmul.f32 %v1010, 0.0625
  %v1081 = vmul.f32 %v1013, 0.0625
  %v1082 = vmul.f32 %v1016, 0.0625
  %v1083 = vmul.f32 %v1019, 0.0625
  %v1084 = vld [vmem:[%s3] sm:$0xff]
  %v1085 = vld [vmem:[%s3 + $0x8] sm:$0xff]
  %v1086 = vld [vmem:[%s3 + $0x10] sm:$0xff]
  %v1087 = vld [vmem:[%s3 + $0x18] sm:$0xff]
  %v1088 = vld [vmem:[%s3 + $0x20] sm:$0xff]
  %v1089 = vld [vmem:[%s3 + $0x28] sm:$0xff]
  %v1090 = vld [vmem:[%s3 + $0x30] sm:$0xff]
  %v1091 = vld [vmem:[%s3 + $0x38] sm:$0xff]
  %v1092 = vld [vmem:[%s3 + $0x40] sm:$0xff]
  %v1093 = vld [vmem:[%s3 + $0x48] sm:$0xff]
  %v1094 = vld [vmem:[%s3 + $0x50] sm:$0xff]
  %v1095 = vld [vmem:[%s3 + $0x58] sm:$0xff]
  %v1096 = vld [vmem:[%s3 + $0x60] sm:$0xff]
  %v1097 = vld [vmem:[%s3 + $0x68] sm:$0xff]
  %v1098 = vld [vmem:[%s3 + $0x70] sm:$0xff]
  %v1099 = vld [vmem:[%s3 + $0x78] sm:$0xff]
  %v1100 = vld [vmem:[%s4] sm:$0x1]
  %v1102 = vlaneseq
  %v1103 = vshrl.u32 %v1102, 7
  %v1104 = vsub.s32 0, %v1103
  %v1105 = vrot.slane %v1100, %v1104
  %v1171 = vlaneseq
  %v1172 = vand.u32 %v1171, 127
  %v1173 = vlaneseq
  %v1174 = vshrl.u32 %v1173, 7
  %v1175 = vsub.s32 %v1172, %v1174
  %v1176 = vrot.slane %v1020, %v1175
  %v1177 = vadd.s32 %v1172, 4294967288
  %v1178 = vlaneseq
  %v1179 = vshrl.u32 %v1178, 7
  %v1180 = vsub.s32 %v1177, %v1179
  %v1181 = vrot.slane %v1021, %v1180
  %vm1182 = vcmask 130112
  %v1183 = vsel %vm1182, %v1181, %v1176
  %v1184 = vadd.s32 %v1172, 4294967280
  %v1185 = vlaneseq
  %v1186 = vshrl.u32 %v1185, 7
  %v1187 = vsub.s32 %v1184, %v1186
  %v1188 = vrot.slane %v1022, %v1187
  %vm1189 = vcmask 195712
  %v1190 = vsel %vm1189, %v1188, %v1183
  %v1191 = vadd.s32 %v1172, 4294967272
  %v1192 = vlaneseq
  %v1193 = vshrl.u32 %v1192, 7
  %v1194 = vsub.s32 %v1191, %v1193
  %v1195 = vrot.slane %v1023, %v1194
  %vm1196 = vcmask 261312
  %v1197 = vsel %vm1196, %v1195, %v1190
  %v1198 = vadd.s32 %v1172, 4294967264
  %v1199 = vlaneseq
  %v1200 = vshrl.u32 %v1199, 7
  %v1201 = vsub.s32 %v1198, %v1200
  %v1202 = vrot.slane %v1024, %v1201
  %vm1203 = vcmask 326912
  %v1204 = vsel %vm1203, %v1202, %v1197
  %v1205 = vadd.s32 %v1172, 4294967256
  %v1206 = vlaneseq
  %v1207 = vshrl.u32 %v1206, 7
  %v1208 = vsub.s32 %v1205, %v1207
  %v1209 = vrot.slane %v1025, %v1208
  %vm1210 = vcmask 392512
  %v1211 = vsel %vm1210, %v1209, %v1204
  %v1212 = vadd.s32 %v1172, 4294967248
  %v1213 = vlaneseq
  %v1214 = vshrl.u32 %v1213, 7
  %v1215 = vsub.s32 %v1212, %v1214
  %v1216 = vrot.slane %v1026, %v1215
  %vm1217 = vcmask 458112
  %v1218 = vsel %vm1217, %v1216, %v1211
  %v1219 = vadd.s32 %v1172, 4294967240
  %v1220 = vlaneseq
  %v1221 = vshrl.u32 %v1220, 7
  %v1222 = vsub.s32 %v1219, %v1221
  %v1223 = vrot.slane %v1027, %v1222
  %vm1224 = vcmask 523712
  %v1225 = vsel %vm1224, %v1223, %v1218
  %v1226 = vadd.s32 %v1172, 4294967232
  %v1227 = vlaneseq
  %v1228 = vshrl.u32 %v1227, 7
  %v1229 = vsub.s32 %v1226, %v1228
  %v1230 = vrot.slane %v1028, %v1229
  %vm1231 = vcmask 589312
  %v1232 = vsel %vm1231, %v1230, %v1225
  %v1233 = vadd.s32 %v1172, 4294967224
  %v1234 = vlaneseq
  %v1235 = vshrl.u32 %v1234, 7
  %v1236 = vsub.s32 %v1233, %v1235
  %v1237 = vrot.slane %v1029, %v1236
  %vm1238 = vcmask 654912
  %v1239 = vsel %vm1238, %v1237, %v1232
  %v1240 = vadd.s32 %v1172, 4294967216
  %v1241 = vlaneseq
  %v1242 = vshrl.u32 %v1241, 7
  %v1243 = vsub.s32 %v1240, %v1242
  %v1244 = vrot.slane %v1030, %v1243
  %vm1245 = vcmask 720512
  %v1246 = vsel %vm1245, %v1244, %v1239
  %v1247 = vadd.s32 %v1172, 4294967208
  %v1248 = vlaneseq
  %v1249 = vshrl.u32 %v1248, 7
  %v1250 = vsub.s32 %v1247, %v1249
  %v1251 = vrot.slane %v1031, %v1250
  %vm1252 = vcmask 786112
  %v1253 = vsel %vm1252, %v1251, %v1246
  %v1254 = vadd.s32 %v1172, 4294967200
  %v1255 = vlaneseq
  %v1256 = vshrl.u32 %v1255, 7
  %v1257 = vsub.s32 %v1254, %v1256
  %v1258 = vrot.slane %v1032, %v1257
  %vm1259 = vcmask 851712
  %v1260 = vsel %vm1259, %v1258, %v1253
  %v1261 = vadd.s32 %v1172, 4294967192
  %v1262 = vlaneseq
  %v1263 = vshrl.u32 %v1262, 7
  %v1264 = vsub.s32 %v1261, %v1263
  %v1265 = vrot.slane %v1033, %v1264
  %vm1266 = vcmask 917312
  %v1267 = vsel %vm1266, %v1265, %v1260
  %v1268 = vadd.s32 %v1172, 4294967184
  %v1269 = vlaneseq
  %v1270 = vshrl.u32 %v1269, 7
  %v1271 = vsub.s32 %v1268, %v1270
  %v1272 = vrot.slane %v1034, %v1271
  %vm1273 = vcmask 982912
  %v1274 = vsel %vm1273, %v1272, %v1267
  %v1275 = vadd.s32 %v1172, 4294967176
  %v1276 = vlaneseq
  %v1277 = vshrl.u32 %v1276, 7
  %v1278 = vsub.s32 %v1275, %v1277
  %v1279 = vrot.slane %v1035, %v1278
  %vm1280 = vcmask 1048512
  %v1281 = vsel %vm1280, %v1279, %v1274
  %v1282 = vlaneseq
  %v1283 = vshrl.u32 %v1282, 7
  %v1284 = vsub.s32 %v1172, %v1283
  %v1285 = vrot.slane %v1036, %v1284
  %v1286 = vlaneseq
  %v1287 = vshrl.u32 %v1286, 7
  %v1288 = vsub.s32 %v1177, %v1287
  %v1289 = vrot.slane %v1037, %v1288
  %v1290 = vsel %vm1182, %v1289, %v1285
  %v1291 = vlaneseq
  %v1292 = vshrl.u32 %v1291, 7
  %v1293 = vsub.s32 %v1184, %v1292
  %v1294 = vrot.slane %v1038, %v1293
  %v1295 = vsel %vm1189, %v1294, %v1290
  %v1296 = vlaneseq
  %v1297 = vshrl.u32 %v1296, 7
  %v1298 = vsub.s32 %v1191, %v1297
  %v1299 = vrot.slane %v1039, %v1298
  %v1300 = vsel %vm1196, %v1299, %v1295
  %v1301 = vlaneseq
  %v1302 = vshrl.u32 %v1301, 7
  %v1303 = vsub.s32 %v1198, %v1302
  %v1304 = vrot.slane %v1040, %v1303
  %v1305 = vsel %vm1203, %v1304, %v1300
  %v1306 = vlaneseq
  %v1307 = vshrl.u32 %v1306, 7
  %v1308 = vsub.s32 %v1205, %v1307
  %v1309 = vrot.slane %v1041, %v1308
  %v1310 = vsel %vm1210, %v1309, %v1305
  %v1311 = vlaneseq
  %v1312 = vshrl.u32 %v1311, 7
  %v1313 = vsub.s32 %v1212, %v1312
  %v1314 = vrot.slane %v1042, %v1313
  %v1315 = vsel %vm1217, %v1314, %v1310
  %v1316 = vlaneseq
  %v1317 = vshrl.u32 %v1316, 7
  %v1318 = vsub.s32 %v1219, %v1317
  %v1319 = vrot.slane %v1043, %v1318
  %v1320 = vsel %vm1224, %v1319, %v1315
  %v1321 = vlaneseq
  %v1322 = vshrl.u32 %v1321, 7
  %v1323 = vsub.s32 %v1226, %v1322
  %v1324 = vrot.slane %v1044, %v1323
  %v1325 = vsel %vm1231, %v1324, %v1320
  %v1326 = vlaneseq
  %v1327 = vshrl.u32 %v1326, 7
  %v1328 = vsub.s32 %v1233, %v1327
  %v1329 = vrot.slane %v1045, %v1328
  %v1330 = vsel %vm1238, %v1329, %v1325
  %v1331 = vlaneseq
  %v1332 = vshrl.u32 %v1331, 7
  %v1333 = vsub.s32 %v1240, %v1332
  %v1334 = vrot.slane %v1046, %v1333
  %v1335 = vsel %vm1245, %v1334, %v1330
  %v1336 = vlaneseq
  %v1337 = vshrl.u32 %v1336, 7
  %v1338 = vsub.s32 %v1247, %v1337
  %v1339 = vrot.slane %v1047, %v1338
  %v1340 = vsel %vm1252, %v1339, %v1335
  %v1341 = vlaneseq
  %v1342 = vshrl.u32 %v1341, 7
  %v1343 = vsub.s32 %v1254, %v1342
  %v1344 = vrot.slane %v1048, %v1343
  %v1345 = vsel %vm1259, %v1344, %v1340
  %v1346 = vlaneseq
  %v1347 = vshrl.u32 %v1346, 7
  %v1348 = vsub.s32 %v1261, %v1347
  %v1349 = vrot.slane %v1049, %v1348
  %v1350 = vsel %vm1266, %v1349, %v1345
  %v1351 = vlaneseq
  %v1352 = vshrl.u32 %v1351, 7
  %v1353 = vsub.s32 %v1268, %v1352
  %v1354 = vrot.slane %v1050, %v1353
  %v1355 = vsel %vm1273, %v1354, %v1350
  %v1356 = vlaneseq
  %v1357 = vshrl.u32 %v1356, 7
  %v1358 = vsub.s32 %v1275, %v1357
  %v1359 = vrot.slane %v1051, %v1358
  %v1360 = vsel %vm1280, %v1359, %v1355
  %v1361 = vlaneseq
  %v1362 = vshrl.u32 %v1361, 7
  %v1363 = vsub.s32 %v1172, %v1362
  %v1364 = vrot.slane %v1052, %v1363
  %v1365 = vlaneseq
  %v1366 = vshrl.u32 %v1365, 7
  %v1367 = vsub.s32 %v1177, %v1366
  %v1368 = vrot.slane %v1053, %v1367
  %v1369 = vsel %vm1182, %v1368, %v1364
  %v1370 = vlaneseq
  %v1371 = vshrl.u32 %v1370, 7
  %v1372 = vsub.s32 %v1184, %v1371
  %v1373 = vrot.slane %v1054, %v1372
  %v1374 = vsel %vm1189, %v1373, %v1369
  %v1375 = vlaneseq
  %v1376 = vshrl.u32 %v1375, 7
  %v1377 = vsub.s32 %v1191, %v1376
  %v1378 = vrot.slane %v1055, %v1377
  %v1379 = vsel %vm1196, %v1378, %v1374
  %v1380 = vlaneseq
  %v1381 = vshrl.u32 %v1380, 7
  %v1382 = vsub.s32 %v1198, %v1381
  %v1383 = vrot.slane %v1056, %v1382
  %v1384 = vsel %vm1203, %v1383, %v1379
  %v1385 = vlaneseq
  %v1386 = vshrl.u32 %v1385, 7
  %v1387 = vsub.s32 %v1205, %v1386
  %v1388 = vrot.slane %v1057, %v1387
  %v1389 = vsel %vm1210, %v1388, %v1384
  %v1390 = vlaneseq
  %v1391 = vshrl.u32 %v1390, 7
  %v1392 = vsub.s32 %v1212, %v1391
  %v1393 = vrot.slane %v1058, %v1392
  %v1394 = vsel %vm1217, %v1393, %v1389
  %v1395 = vlaneseq
  %v1396 = vshrl.u32 %v1395, 7
  %v1397 = vsub.s32 %v1219, %v1396
  %v1398 = vrot.slane %v1059, %v1397
  %v1399 = vsel %vm1224, %v1398, %v1394
  %v1400 = vlaneseq
  %v1401 = vshrl.u32 %v1400, 7
  %v1402 = vsub.s32 %v1226, %v1401
  %v1403 = vrot.slane %v1060, %v1402
  %v1404 = vsel %vm1231, %v1403, %v1399
  %v1405 = vlaneseq
  %v1406 = vshrl.u32 %v1405, 7
  %v1407 = vsub.s32 %v1233, %v1406
  %v1408 = vrot.slane %v1061, %v1407
  %v1409 = vsel %vm1238, %v1408, %v1404
  %v1410 = vlaneseq
  %v1411 = vshrl.u32 %v1410, 7
  %v1412 = vsub.s32 %v1240, %v1411
  %v1413 = vrot.slane %v1062, %v1412
  %v1414 = vsel %vm1245, %v1413, %v1409
  %v1415 = vlaneseq
  %v1416 = vshrl.u32 %v1415, 7
  %v1417 = vsub.s32 %v1247, %v1416
  %v1418 = vrot.slane %v1063, %v1417
  %v1419 = vsel %vm1252, %v1418, %v1414
  %v1420 = vlaneseq
  %v1421 = vshrl.u32 %v1420, 7
  %v1422 = vsub.s32 %v1254, %v1421
  %v1423 = vrot.slane %v1064, %v1422
  %v1424 = vsel %vm1259, %v1423, %v1419
  %v1425 = vlaneseq
  %v1426 = vshrl.u32 %v1425, 7
  %v1427 = vsub.s32 %v1261, %v1426
  %v1428 = vrot.slane %v1065, %v1427
  %v1429 = vsel %vm1266, %v1428, %v1424
  %v1430 = vlaneseq
  %v1431 = vshrl.u32 %v1430, 7
  %v1432 = vsub.s32 %v1268, %v1431
  %v1433 = vrot.slane %v1066, %v1432
  %v1434 = vsel %vm1273, %v1433, %v1429
  %v1435 = vlaneseq
  %v1436 = vshrl.u32 %v1435, 7
  %v1437 = vsub.s32 %v1275, %v1436
  %v1438 = vrot.slane %v1067, %v1437
  %v1439 = vsel %vm1280, %v1438, %v1434
  %v1440 = vlaneseq
  %v1441 = vshrl.u32 %v1440, 7
  %v1442 = vsub.s32 %v1172, %v1441
  %v1443 = vrot.slane %v1068, %v1442
  %v1444 = vlaneseq
  %v1445 = vshrl.u32 %v1444, 7
  %v1446 = vsub.s32 %v1177, %v1445
  %v1447 = vrot.slane %v1069, %v1446
  %v1448 = vsel %vm1182, %v1447, %v1443
  %v1449 = vlaneseq
  %v1450 = vshrl.u32 %v1449, 7
  %v1451 = vsub.s32 %v1184, %v1450
  %v1452 = vrot.slane %v1070, %v1451
  %v1453 = vsel %vm1189, %v1452, %v1448
  %v1454 = vlaneseq
  %v1455 = vshrl.u32 %v1454, 7
  %v1456 = vsub.s32 %v1191, %v1455
  %v1457 = vrot.slane %v1071, %v1456
  %v1458 = vsel %vm1196, %v1457, %v1453
  %v1459 = vlaneseq
  %v1460 = vshrl.u32 %v1459, 7
  %v1461 = vsub.s32 %v1198, %v1460
  %v1462 = vrot.slane %v1072, %v1461
  %v1463 = vsel %vm1203, %v1462, %v1458
  %v1464 = vlaneseq
  %v1465 = vshrl.u32 %v1464, 7
  %v1466 = vsub.s32 %v1205, %v1465
  %v1467 = vrot.slane %v1073, %v1466
  %v1468 = vsel %vm1210, %v1467, %v1463
  %v1469 = vlaneseq
  %v1470 = vshrl.u32 %v1469, 7
  %v1471 = vsub.s32 %v1212, %v1470
  %v1472 = vrot.slane %v1074, %v1471
  %v1473 = vsel %vm1217, %v1472, %v1468
  %v1474 = vlaneseq
  %v1475 = vshrl.u32 %v1474, 7
  %v1476 = vsub.s32 %v1219, %v1475
  %v1477 = vrot.slane %v1075, %v1476
  %v1478 = vsel %vm1224, %v1477, %v1473
  %v1479 = vlaneseq
  %v1480 = vshrl.u32 %v1479, 7
  %v1481 = vsub.s32 %v1226, %v1480
  %v1482 = vrot.slane %v1076, %v1481
  %v1483 = vsel %vm1231, %v1482, %v1478
  %v1484 = vlaneseq
  %v1485 = vshrl.u32 %v1484, 7
  %v1486 = vsub.s32 %v1233, %v1485
  %v1487 = vrot.slane %v1077, %v1486
  %v1488 = vsel %vm1238, %v1487, %v1483
  %v1489 = vlaneseq
  %v1490 = vshrl.u32 %v1489, 7
  %v1491 = vsub.s32 %v1240, %v1490
  %v1492 = vrot.slane %v1078, %v1491
  %v1493 = vsel %vm1245, %v1492, %v1488
  %v1494 = vlaneseq
  %v1495 = vshrl.u32 %v1494, 7
  %v1496 = vsub.s32 %v1247, %v1495
  %v1497 = vrot.slane %v1079, %v1496
  %v1498 = vsel %vm1252, %v1497, %v1493
  %v1499 = vlaneseq
  %v1500 = vshrl.u32 %v1499, 7
  %v1501 = vsub.s32 %v1254, %v1500
  %v1502 = vrot.slane %v1080, %v1501
  %v1503 = vsel %vm1259, %v1502, %v1498
  %v1504 = vlaneseq
  %v1505 = vshrl.u32 %v1504, 7
  %v1506 = vsub.s32 %v1261, %v1505
  %v1507 = vrot.slane %v1081, %v1506
  %v1508 = vsel %vm1266, %v1507, %v1503
  %v1509 = vlaneseq
  %v1510 = vshrl.u32 %v1509, 7
  %v1511 = vsub.s32 %v1268, %v1510
  %v1512 = vrot.slane %v1082, %v1511
  %v1513 = vsel %vm1273, %v1512, %v1508
  %v1514 = vlaneseq
  %v1515 = vshrl.u32 %v1514, 7
  %v1516 = vsub.s32 %v1275, %v1515
  %v1517 = vrot.slane %v1083, %v1516
  %v1518 = vsel %vm1280, %v1517, %v1513
  %v1519 = vsel %vm120, %v1360, %v1281
  %v1520 = vsel %vm122, %v1439, %v1519
  %v1521 = vsel %vm124, %v1518, %v1520
  %1523 = vmatprep.subr.mxu0 0.0
  %1524 = vmatpush1.msra.mxu0 %v1084
  %1525 = vmatprep.subr.mxu0 0.0
  %1526 = vmatpush1.msra.mxu0 %v1085
  %1527 = vmatprep.subr.mxu0 0.0
  %1528 = vmatpush1.msra.mxu0 %v1086
  %1529 = vmatprep.subr.mxu0 0.0
  %1530 = vmatpush1.msra.mxu0 %v1087
  %1531 = vmatprep.subr.mxu0 0.0
  %1532 = vmatpush1.msra.mxu0 %v1088
  %1533 = vmatprep.subr.mxu0 0.0
  %1534 = vmatpush1.msra.mxu0 %v1089
  %1535 = vmatprep.subr.mxu0 0.0
  %1536 = vmatpush1.msra.mxu0 %v1090
  %1537 = vmatprep.subr.mxu0 0.0
  %1538 = vmatpush1.msra.mxu0 %v1091
  %1539 = vmatprep.subr.mxu0 0.0
  %1540 = vmatpush1.msra.mxu0 %v1092
  %1541 = vmatprep.subr.mxu0 0.0
  %1542 = vmatpush1.msra.mxu0 %v1093
  %1543 = vmatprep.subr.mxu0 0.0
  %1544 = vmatpush1.msra.mxu0 %v1094
  %1545 = vmatprep.subr.mxu0 0.0
  %1546 = vmatpush1.msra.mxu0 %v1095
  %1547 = vmatprep.subr.mxu0 0.0
  %1548 = vmatpush1.msra.mxu0 %v1096
  %1549 = vmatprep.subr.mxu0 0.0
  %1550 = vmatpush1.msra.mxu0 %v1097
  %1551 = vmatprep.subr.mxu0 0.0
  %1552 = vmatpush1.msra.mxu0 %v1098
  %1553 = vmatprep.subr.mxu0 0.0
  %1554 = vmatpush1.msra.mxu0 %v1099
  %1555 = vmatprep.subr.mxu0 0.0
  %1556 = vmatpush1.msra.mxu0 0.0
  %1557 = vmatprep.subr.mxu0 0.0
  %1558 = vmatpush1.msra.mxu0 0.0
  %1559 = vmatprep.subr.mxu0 0.0
  %1560 = vmatpush1.msra.mxu0 0.0
  %1561 = vmatprep.subr.mxu0 0.0
  %1562 = vmatpush1.msra.mxu0 0.0
  %1563 = vmatprep.subr.mxu0 0.0
  %1564 = vmatpush1.msra.mxu0 0.0
  %1565 = vmatprep.subr.mxu0 0.0
  %1566 = vmatpush1.msra.mxu0 0.0
  %1567 = vmatprep.subr.mxu0 0.0
  %1568 = vmatpush1.msra.mxu0 0.0
  %1569 = vmatprep.subr.mxu0 0.0
  %1570 = vmatpush1.msra.mxu0 0.0
  %1571 = vmatprep.subr.mxu0 0.0
  %1572 = vmatpush1.msra.mxu0 0.0
  %1573 = vmatprep.subr.mxu0 0.0
  %1574 = vmatpush1.msra.mxu0 0.0
  %1575 = vmatprep.subr.mxu0 0.0
  %1576 = vmatpush1.msra.mxu0 0.0
  %1577 = vmatprep.subr.mxu0 0.0
  %1578 = vmatpush1.msra.mxu0 0.0
  %1579 = vmatprep.subr.mxu0 0.0
  %1580 = vmatpush1.msra.mxu0 0.0
  %1581 = vmatprep.subr.mxu0 0.0
  %1582 = vmatpush1.msra.mxu0 0.0
  %1583 = vmatprep.subr.mxu0 0.0
  %1584 = vmatpush1.msra.mxu0 0.0
  %1585 = vmatprep.subr.mxu0 0.0
  %1586 = vmatpush1.msra.mxu0 0.0
  %1587 = vmatprep.mubr.f32.mxu0 0.0
  %1588 = vmatmul.mubr.f32.gmra.mrb[0].mxu0 %v1521
  %v1589 = vpop.f32.mrb[0].mxu0
  %v1590 = vadd.f32 %v1105, %v1589
  %v1591 = vpop.f32.mrb[0].mxu0
  %1592 = vdwg.mxu0
  %vm1593 = vcmask 322560
  %1594 = vst.msk [vmem:[%s5] sm:$0xf] %vm1593, %v1590
  // Predicated region
  $region22: #{resnet_reid_forward.1} parent=0 // pred_check
    _
  $region23: #{resnet_reid_forward.1} parent=0 // pred_check_branch
    %1596 = sbr.rel (0) target = $region25
  $region24: #{resnet_reid_forward.1} parent=0 // pred_region
    _
  $region25: #{resnet_reid_forward.1} parent=0 // pred_fallthru
    _
  // Predicated region
  $region26: #{resnet_reid_forward.1} parent=0 // pred_check
    _
  $region27: #{resnet_reid_forward.1} parent=0 // pred_check_branch
    %1598 = sbr.rel (0) target = $region29
  $region28: #{resnet_reid_forward.1} parent=0 // pred_region
    _
  $region29: #{resnet_reid_forward.1} parent=0 // pred_fallthru
    _
  // Predicated region
  $region30: #{resnet_reid_forward.1} parent=0 // pred_check
    _
  $region31: #{resnet_reid_forward.1} parent=0 // pred_check_branch
    %1600 = sbr.rel (0) target = $region33
  $region32: #{resnet_reid_forward.1} parent=0 // pred_region
    _
  $region33: #{resnet_reid_forward.1} parent=0 // pred_fallthru
    _
  // Predicated region
  $region34: #{resnet_reid_forward.1} parent=0 // pred_check
    _
  $region35: #{resnet_reid_forward.1} parent=0 // pred_check_branch
    %1602 = sbr.rel (0) target = $region37
  $region36: #{resnet_reid_forward.1} parent=0 // pred_region
    _
  $region37: #{resnet_reid_forward.1} parent=0 // pred_fallthru
    _

// kernel: squeeze.3
$region0: #{squeeze.3}
  %s0 = inlined_call_operand.vmem [shape: f32[4,16], index: 0, kind: input, shape index: {}]
  %s1 = inlined_call_operand.hbm [shape: f32[4,1,4,4], index: 1, kind: output, shape index: {}]
  $region1: #{squeeze.3} parent=0
    #allocation0 [shape = 'u8[8192]{0}', space=vmem, size = 0x2000, scoped, tag = 'operand span for operand 1']
    #allocation1 [shape = 's32[1]{0}', space=sflag, size = 0x4, scoped, tag = 'scoped memory for squeeze.3']
    #allocation2 [shape = 'u8[16384]{0}', space=vmem, size = 0x4000, scoped, tag = 'scoped mem for output reshape']
    #allocation3 [shape = 'u8[4096]{0}', space=vmem, size = 0x1000, scoped, tag = 'scoped mem for input reshape']
    %2 = vsyncpa [#allocation1], 0
    %s4 = sshllo.u32 0, 4
    %v5 = vld [vmem:[%s0] sm:%s4]
    %6 = vst [vmem:[#allocation3] sm:%s4] %v5
    %v7 = vld [vmem:[#allocation3] sm:$0xf]
    %vm8 = vcmask 31744
    %9 = vst.msk [vmem:[#allocation2] ss:$8 sm:$0xf] %vm8, %v7
    %v10 = vld [vmem:[#allocation3] sm:$0xf]
    %11 = vrot.lane.b32.xlu0 %v10, 124
    %v12 = vpop.permute.xlu0 %11
    %vm13 = vcmask 31744
    %s14 = scalar_lea.vmem [#allocation2], 1
    %15 = vst.msk [vmem:[%s14] ss:$8 sm:$0xf] %vm13, %v12
    %v16 = vld [vmem:[#allocation3] sm:$0xf]
    %17 = vrot.lane.b32.xlu0 %v16, 120
    %v18 = vpop.permute.xlu0 %17
    %vm19 = vcmask 31744
    %s20 = scalar_lea.vmem [#allocation2], 2
    %21 = vst.msk [vmem:[%s20] ss:$8 sm:$0xf] %vm19, %v18
    %v22 = vld [vmem:[#allocation3] sm:$0xf]
    %23 = vrot.lane.b32.xlu0 %v22, 116
    %v24 = vpop.permute.xlu0 %23
    %vm25 = vcmask 31744
    %s26 = scalar_lea.vmem [#allocation2], 3
    %27 = vst.msk [vmem:[%s26] ss:$8 sm:$0xf] %vm25, %v24
    %s29 = sshllo.u32 0, 4
    %v31 = vld [vmem:[#allocation2] sm:%s29]
    %s32 = sshllo.u32 0, 4
    %33 = vst [vmem:[#allocation0] sm:%s32] %v31
    %s34 = scalar_lea.vmem [#allocation2], 8
    %v35 = vld [vmem:[%s34] sm:%s29]
    %s36 = sshllo.u32 0, 4
    %s37 = scalar_lea.vmem [#allocation0], 4
    %38 = vst [vmem:[%s37] sm:%s36] %v35
    %s39 = scalar_lea.vmem [#allocation2], 16
    %v40 = vld [vmem:[%s39] sm:%s29]
    %s41 = sshllo.u32 0, 4
    %s42 = smul.addr 4, 2
    %s43 = scalar_lea.vmem [#allocation0], %s42
    %44 = vst [vmem:[%s43] sm:%s41] %v40
    %s45 = scalar_lea.vmem [#allocation2], 24
    %v46 = vld [vmem:[%s45] sm:%s29]
    %s47 = sshllo.u32 0, 4
    %s48 = smul.addr 4, 3
    %s49 = scalar_lea.vmem [#allocation0], %s48
    %50 = vst [vmem:[%s49] sm:%s47] %v46
    %s52 = ssub.s32 256, 256
    %53 = vsyncadd [#allocation1], %s52
    %s55 = sshll.u32 [#allocation0], 4
    %s56 = int_to_ptr.vmem [resolvable:$true] %s55
    %58 = dma.vmem_to_hbm [thread:$0]  %s56, 256, %s1, [#allocation1]
    %59 = dma.done [#allocation1], 256
    %60 = vsyncpa [#allocation1], 1

</llo_original>
